<compile_context>
chip_gen: v5e
topology: v5e:2x2
jax: 0.10.0
libtpu: 0.0.40
codegen_flags: <defaults>
</compile_context>

<pallas_src>
import functools
import math

import jax
import jax.numpy as jnp
from jax.experimental import pallas as pl
from jax.experimental.pallas import tpu as pltpu

LN_EPS = 1e-5  # nn.LayerNorm default

# Abramowitz & Stegun 7.1.26 erf approximation (max abs error 1.5e-7).
_ERF_P = 0.3275911
_ERF_A1 = 0.254829592
_ERF_A2 = -0.284496736
_ERF_A3 = 1.421413741
_ERF_A4 = -1.453152027
_ERF_A5 = 1.061405429


def _erf(z):
    sgn = jnp.where(z >= 0.0, 1.0, -1.0)
    a = jnp.abs(z)
    t = 1.0 / (1.0 + _ERF_P * a)
    poly = t * (_ERF_A1 + t * (_ERF_A2 + t * (_ERF_A3 + t * (_ERF_A4 + t * _ERF_A5))))
    return sgn * (1.0 - poly * jnp.exp(-a * a))


def _gelu_exact(v):
    # nn.GELU default (approximate='none'): 0.5 * x * (1 + erf(x / sqrt(2)))
    return 0.5 * v * (1.0 + _erf(v * (1.0 / math.sqrt(2.0))))


def _layer_norm(v, w, b):
    mu = jnp.mean(v, axis=-1, keepdims=True)
    c = v - mu
    var = jnp.mean(c * c, axis=-1, keepdims=True)
    return c * jax.lax.rsqrt(var + LN_EPS) * w + b


# ---------------------------------------------------------------------------
# Fused transformer-block kernel: one batch element per grid step.
# ---------------------------------------------------------------------------
def _block_kernel(x_ref,
                  ln1_w_ref, ln1_b_ref,
                  wqkv_ref, wproj_ref, bproj_ref,
                  ln2_w_ref, ln2_b_ref,
                  w1_ref, b1_ref, w2_ref, b2_ref,
                  o_ref, *, num_heads):
    x = x_ref[0]                                   # (N, D), f32
    N, D = x.shape
    hd = D // num_heads
    scale = hd ** -0.5

    # ---- attention branch -------------------------------------------------
    xn = _layer_norm(x, ln1_w_ref[...], ln1_b_ref[...])
    qkv = jnp.dot(xn, wqkv_ref[...], preferred_element_type=jnp.float32)   # (N, 3D)
    wproj = wproj_ref[...]                                                 # (D, D)

    attn_proj = jnp.zeros((N, D), jnp.float32)
    for h in range(num_heads):
        q_h = qkv[:, h * hd:(h + 1) * hd]                  # (N, hd)
        k_h = qkv[:, D + h * hd:D + (h + 1) * hd]          # (N, hd)
        v_h = qkv[:, 2 * D + h * hd:2 * D + (h + 1) * hd]  # (N, hd)

        # scores = (q @ k^T) * scale, contracting head_dim (no explicit transpose)
        s = jax.lax.dot_general(q_h, k_h, (((1,), (1,)), ((), ())),
                                preferred_element_type=jnp.float32) * scale
        s = s - jnp.max(s, axis=-1, keepdims=True)
        p = jnp.exp(s)
        p = p / jnp.sum(p, axis=-1, keepdims=True)

        o_h = jnp.dot(p, v_h, preferred_element_type=jnp.float32)          # (N, hd)
        # Fold the head-concat directly into the output projection:
        #   concat_h(o_h) @ Wproj == sum_h o_h @ Wproj[h*hd:(h+1)*hd, :]
        attn_proj = attn_proj + jnp.dot(o_h, wproj[h * hd:(h + 1) * hd, :],
                                        preferred_element_type=jnp.float32)

    x1 = x + attn_proj + bproj_ref[...]            # residual 1

    # ---- MLP branch ---------------------------------------------------------
    xn2 = _layer_norm(x1, ln2_w_ref[...], ln2_b_ref[...])
    h1 = jnp.dot(xn2, w1_ref[...], preferred_element_type=jnp.float32) + b1_ref[...]
    h1 = _gelu_exact(h1)
    y = jnp.dot(h1, w2_ref[...], preferred_element_type=jnp.float32) + b2_ref[...]

    o_ref[0] = (x1 + y).astype(o_ref.dtype)        # residual 2


# ---------------------------------------------------------------------------
# Wrapper
# ---------------------------------------------------------------------------
def vit_block_forward(x, params, *, num_heads):
    """x: (B, N, D) float32. Returns (B, N, D)."""
    B, N, D = x.shape
    H = params["w1"].shape[1]

    def _resident(shape):
        # Weight/param blocks: whole array, same block every grid step -> stays in VMEM.
        return pl.BlockSpec(shape, lambda *_: (0,) * len(shape))

    kernel = functools.partial(_block_kernel, num_heads=num_heads)
    return pl.pallas_call(
        kernel,
        out_shape=jax.ShapeDtypeStruct((B, N, D), x.dtype),
        grid=(B,),
        in_specs=[
            pl.BlockSpec((1, N, D), lambda b: (b, 0, 0)),      # x, one batch per step
            _resident((1, D)), _resident((1, D)),              # ln1 weight / bias
            _resident((D, 3 * D)),                             # qkv weight (D, 3D), pre-transposed
            _resident((D, D)), _resident((1, D)),              # proj weight / bias
            _resident((1, D)), _resident((1, D)),              # ln2 weight / bias
            _resident((D, H)), _resident((1, H)),              # fc1 weight / bias
            _resident((H, D)), _resident((1, D)),              # fc2 weight / bias
        ],
        out_specs=pl.BlockSpec((1, N, D), lambda b: (b, 0, 0)),
        compiler_params=pltpu.CompilerParams(
            dimension_semantics=("parallel",),                 # shard batch across TCs (v7x)
            vmem_limit_bytes=32 * 1024 * 1024,
        ),
    )(x, params["ln1_w"], params["ln1_b"],
      params["wqkv"], params["wproj"], params["bproj"],
      params["ln2_w"], params["ln2_b"],
      params["w1"], params["b1"], params["w2"], params["b2"])


# ---------------------------------------------------------------------------
# Pure-JAX reference (for a correctness check) and parameter init
# ---------------------------------------------------------------------------
def _block_reference(x, params, *, num_heads):
    def ln(v, w, b):
        mu = jnp.mean(v, -1, keepdims=True)
        var = jnp.mean((v - mu) ** 2, -1, keepdims=True)
        return (v - mu) * jax.lax.rsqrt(var + LN_EPS) * w + b

    B, N, D = x.shape
    hd = D // num_heads
    xn = ln(x, params["ln1_w"], params["ln1_b"])
    qkv = (xn @ params["wqkv"]).reshape(B, N, 3, num_heads, hd).transpose(2, 0, 3, 1, 4)
    q, k, v = qkv[0], qkv[1], qkv[2]
    attn = jnp.einsum("bhqd,bhkd->bhqk", q, k) * hd ** -0.5
    attn = jax.nn.softmax(attn, axis=-1)
    o = jnp.einsum("bhqk,bhkd->bhqd", attn, v).transpose(0, 2, 1, 3).reshape(B, N, D)
    x = x + o @ params["wproj"] + params["bproj"]
    xn2 = ln(x, params["ln2_w"], params["ln2_b"])
    h = jax.nn.gelu(xn2 @ params["w1"] + params["b1"], approximate=False)
    return x + h @ params["w2"] + params["b2"]


def init_params(key, dim, mlp_ratio=4.0):
    hidden = int(dim * mlp_ratio)
    k = jax.random.split(key, 7)
    std = 0.02
    return dict(
        ln1_w=jnp.ones((1, dim), jnp.float32),
        ln1_b=jnp.zeros((1, dim), jnp.float32),
        wqkv=std * jax.random.normal(k[0], (dim, 3 * dim), jnp.float32),
        wproj=std * jax.random.normal(k[1], (dim, dim), jnp.float32),
        bproj=0.01 * jax.random.normal(k[2], (1, dim), jnp.float32),
        ln2_w=jnp.ones((1, dim), jnp.float32),
        ln2_b=jnp.zeros((1, dim), jnp.float32),
        w1=std * jax.random.normal(k[3], (dim, hidden), jnp.float32),
        b1=0.01 * jax.random.normal(k[4], (1, hidden), jnp.float32),
        w2=std * jax.random.normal(k[5], (hidden, dim), jnp.float32),
        b2=0.01 * jax.random.normal(k[6], (1, dim), jnp.float32),
    )


if __name__ == "__main__":
    B, N, D, NUM_HEADS = 2, 16, 128, 4    # small, lane-dense (D multiple of 128)
    key = jax.random.PRNGKey(0)
    kx, kp = jax.random.split(key)
    x = jax.random.normal(kx, (B, N, D), dtype=jnp.float32)
    params = init_params(kp, D)

    y = vit_block_forward(x, params, num_heads=NUM_HEADS)
    jax.block_until_ready(y)

    assert y.shape == (B, N, D)
    assert bool(jnp.all(jnp.isfinite(y)))
    y_ref = _block_reference(x, params, num_heads=NUM_HEADS)
    err = float(jnp.max(jnp.abs(y - y_ref)))
    assert err < 5e-2, f"max abs err vs reference: {err}"
    print("KERNEL_OK")
</pallas_src>

<mosaic_0001>
module attributes {stable_mosaic.version = 11 : i64} {
  func.func @_block_kernel(%arg0: i32, %arg1: memref<1x16x128xf32, #tpu.memory_space<vmem>>, %arg2: memref<1x128xf32, #tpu.memory_space<vmem>>, %arg3: memref<1x128xf32, #tpu.memory_space<vmem>>, %arg4: memref<128x384xf32, #tpu.memory_space<vmem>>, %arg5: memref<128x128xf32, #tpu.memory_space<vmem>>, %arg6: memref<1x128xf32, #tpu.memory_space<vmem>>, %arg7: memref<1x128xf32, #tpu.memory_space<vmem>>, %arg8: memref<1x128xf32, #tpu.memory_space<vmem>>, %arg9: memref<128x512xf32, #tpu.memory_space<vmem>>, %arg10: memref<1x512xf32, #tpu.memory_space<vmem>>, %arg11: memref<512x128xf32, #tpu.memory_space<vmem>>, %arg12: memref<1x128xf32, #tpu.memory_space<vmem>>, %arg13: memref<1x16x128xf32, #tpu.memory_space<vmem>>) attributes {dimension_semantics = [#tpu.dimension_semantics<parallel>], iteration_bounds = array<i64: 2>, scalar_prefetch = 0 : i64, scratch_operands = 0 : i64, tpu.core_type = #tpu.core_type<tc>, window_params = [{transform_indices = @transform_0, window_bounds = array<i64: 1, 16, 128>}, {pipeline_mode = #tpu.pipeline_mode<synchronous>, transform_indices = @transform_1, window_bounds = array<i64: 1, 128>}, {pipeline_mode = #tpu.pipeline_mode<synchronous>, transform_indices = @transform_2, window_bounds = array<i64: 1, 128>}, {pipeline_mode = #tpu.pipeline_mode<synchronous>, transform_indices = @transform_3, window_bounds = array<i64: 128, 384>}, {pipeline_mode = #tpu.pipeline_mode<synchronous>, transform_indices = @transform_4, window_bounds = array<i64: 128, 128>}, {pipeline_mode = #tpu.pipeline_mode<synchronous>, transform_indices = @transform_5, window_bounds = array<i64: 1, 128>}, {pipeline_mode = #tpu.pipeline_mode<synchronous>, transform_indices = @transform_6, window_bounds = array<i64: 1, 128>}, {pipeline_mode = #tpu.pipeline_mode<synchronous>, transform_indices = @transform_7, window_bounds = array<i64: 1, 128>}, {pipeline_mode = #tpu.pipeline_mode<synchronous>, transform_indices = @transform_8, window_bounds = array<i64: 128, 512>}, {pipeline_mode = #tpu.pipeline_mode<synchronous>, transform_indices = @transform_9, window_bounds = array<i64: 1, 512>}, {pipeline_mode = #tpu.pipeline_mode<synchronous>, transform_indices = @transform_10, window_bounds = array<i64: 512, 128>}, {pipeline_mode = #tpu.pipeline_mode<synchronous>, transform_indices = @transform_11, window_bounds = array<i64: 1, 128>}, {transform_indices = @transform_12, window_bounds = array<i64: 1, 16, 128>}]} {
    %c0 = arith.constant 0 : index
    %c0_0 = arith.constant 0 : index
    %c0_1 = arith.constant 0 : index
    %0 = vector.load %arg1[%c0, %c0_0, %c0_1] : memref<1x16x128xf32, #tpu.memory_space<vmem>>, vector<1x16x128xf32>
    %1 = vector.shape_cast %0 : vector<1x16x128xf32> to vector<16x128xf32>
    %c0_2 = arith.constant 0 : index
    %c0_3 = arith.constant 0 : index
    %2 = vector.load %arg2[%c0_2, %c0_3] : memref<1x128xf32, #tpu.memory_space<vmem>>, vector<1x128xf32>
    %c0_4 = arith.constant 0 : index
    %c0_5 = arith.constant 0 : index
    %3 = vector.load %arg3[%c0_4, %c0_5] : memref<1x128xf32, #tpu.memory_space<vmem>>, vector<1x128xf32>
    %cst = arith.constant dense<0.000000e+00> : vector<16xf32>
    %4 = vector.multi_reduction <add>, %1, %cst [1] : vector<16x128xf32> to vector<16xf32>
    %5 = vector.shape_cast %4 : vector<16xf32> to vector<16x1xf32>
    %cst_6 = arith.constant 1.280000e+02 : f32
    %6 = vector.broadcast %cst_6 : f32 to vector<16x1xf32>
    %7 = arith.divf %5, %6 : vector<16x1xf32>
    %8 = vector.broadcast %7 : vector<16x1xf32> to vector<16x128xf32>
    %9 = arith.subf %1, %8 : vector<16x128xf32>
    %10 = arith.mulf %9, %9 : vector<16x128xf32>
    %cst_7 = arith.constant dense<0.000000e+00> : vector<16xf32>
    %11 = vector.multi_reduction <add>, %10, %cst_7 [1] : vector<16x128xf32> to vector<16xf32>
    %12 = vector.shape_cast %11 : vector<16xf32> to vector<16x1xf32>
    %cst_8 = arith.constant 1.280000e+02 : f32
    %13 = vector.broadcast %cst_8 : f32 to vector<16x1xf32>
    %14 = arith.divf %12, %13 : vector<16x1xf32>
    %cst_9 = arith.constant 9.99999974E-6 : f32
    %15 = vector.broadcast %cst_9 : f32 to vector<16x1xf32>
    %16 = arith.addf %14, %15 : vector<16x1xf32>
    %17 = math.rsqrt %16 : vector<16x1xf32>
    %18 = vector.broadcast %17 : vector<16x1xf32> to vector<16x128xf32>
    %19 = arith.mulf %9, %18 : vector<16x128xf32>
    %20 = vector.broadcast %2 : vector<1x128xf32> to vector<16x128xf32>
    %21 = arith.mulf %19, %20 : vector<16x128xf32>
    %22 = vector.broadcast %3 : vector<1x128xf32> to vector<16x128xf32>
    %23 = arith.addf %21, %22 : vector<16x128xf32>
    %c0_10 = arith.constant 0 : index
    %c0_11 = arith.constant 0 : index
    %24 = vector.load %arg4[%c0_10, %c0_11] : memref<128x384xf32, #tpu.memory_space<vmem>>, vector<128x384xf32>
    %cst_12 = arith.constant dense<0.000000e+00> : vector<16x384xf32>
    %25 = tpu.matmul %23, %24, %cst_12 {dimension_numbers = #tpu.dot_dimension_numbers<[1], [0], [0], [1], [0, 0, 1, 1], [], []>} : vector<16x128xf32>, vector<128x384xf32>, vector<16x384xf32> -> vector<16x384xf32>
    %c0_13 = arith.constant 0 : index
    %c0_14 = arith.constant 0 : index
    %26 = vector.load %arg5[%c0_13, %c0_14] : memref<128x128xf32, #tpu.memory_space<vmem>>, vector<128x128xf32>
    %cst_15 = arith.constant 0.000000e+00 : f32
    %27 = vector.broadcast %cst_15 : f32 to vector<16x128xf32>
    %28 = vector.extract_strided_slice %25 {offsets = [0, 0], sizes = [16, 32], strides = [1, 1]} : vector<16x384xf32> to vector<16x32xf32>
    %29 = vector.extract_strided_slice %25 {offsets = [0, 128], sizes = [16, 32], strides = [1, 1]} : vector<16x384xf32> to vector<16x32xf32>
    %30 = vector.extract_strided_slice %25 {offsets = [0, 256], sizes = [16, 32], strides = [1, 1]} : vector<16x384xf32> to vector<16x32xf32>
    %cst_16 = arith.constant dense<0.000000e+00> : vector<16x16xf32>
    %31 = tpu.matmul %28, %29, %cst_16 {dimension_numbers = #tpu.dot_dimension_numbers<[1], [1], [0], [0], [0, 0, 1, 0], [], []>} : vector<16x32xf32>, vector<16x32xf32>, vector<16x16xf32> -> vector<16x16xf32>
    %cst_17 = arith.constant 0.176776692 : f32
    %32 = vector.broadcast %cst_17 : f32 to vector<16x16xf32>
    %33 = arith.mulf %31, %32 : vector<16x16xf32>
    %cst_18 = arith.constant dense<0xFF800000> : vector<16xf32>
    %34 = vector.multi_reduction <maximumf>, %33, %cst_18 [1] : vector<16x16xf32> to vector<16xf32>
    %35 = vector.shape_cast %34 : vector<16xf32> to vector<16x1xf32>
    %36 = vector.broadcast %35 : vector<16x1xf32> to vector<16x16xf32>
    %37 = arith.subf %33, %36 : vector<16x16xf32>
    %38 = math.exp %37 : vector<16x16xf32>
    %cst_19 = arith.constant dense<0.000000e+00> : vector<16xf32>
    %39 = vector.multi_reduction <add>, %38, %cst_19 [1] : vector<16x16xf32> to vector<16xf32>
    %40 = vector.shape_cast %39 : vector<16xf32> to vector<16x1xf32>
    %41 = vector.broadcast %40 : vector<16x1xf32> to vector<16x16xf32>
    %42 = arith.divf %38, %41 : vector<16x16xf32>
    %cst_20 = arith.constant dense<0.000000e+00> : vector<16x32xf32>
    %43 = tpu.matmul %42, %30, %cst_20 {dimension_numbers = #tpu.dot_dimension_numbers<[1], [0], [0], [1], [0, 0, 1, 1], [], []>} : vector<16x16xf32>, vector<16x32xf32>, vector<16x32xf32> -> vector<16x32xf32>
    %44 = vector.extract_strided_slice %26 {offsets = [0, 0], sizes = [32, 128], strides = [1, 1]} : vector<128x128xf32> to vector<32x128xf32>
    %cst_21 = arith.constant dense<0.000000e+00> : vector<16x128xf32>
    %45 = tpu.matmul %43, %44, %cst_21 {dimension_numbers = #tpu.dot_dimension_numbers<[1], [0], [0], [1], [0, 0, 1, 1], [], []>} : vector<16x32xf32>, vector<32x128xf32>, vector<16x128xf32> -> vector<16x128xf32>
    %46 = arith.addf %27, %45 : vector<16x128xf32>
    %47 = vector.extract_strided_slice %25 {offsets = [0, 32], sizes = [16, 32], strides = [1, 1]} : vector<16x384xf32> to vector<16x32xf32>
    %48 = vector.extract_strided_slice %25 {offsets = [0, 160], sizes = [16, 32], strides = [1, 1]} : vector<16x384xf32> to vector<16x32xf32>
    %49 = vector.extract_strided_slice %25 {offsets = [0, 288], sizes = [16, 32], strides = [1, 1]} : vector<16x384xf32> to vector<16x32xf32>
    %cst_22 = arith.constant dense<0.000000e+00> : vector<16x16xf32>
    %50 = tpu.matmul %47, %48, %cst_22 {dimension_numbers = #tpu.dot_dimension_numbers<[1], [1], [0], [0], [0, 0, 1, 0], [], []>} : vector<16x32xf32>, vector<16x32xf32>, vector<16x16xf32> -> vector<16x16xf32>
    %cst_23 = arith.constant 0.176776692 : f32
    %51 = vector.broadcast %cst_23 : f32 to vector<16x16xf32>
    %52 = arith.mulf %50, %51 : vector<16x16xf32>
    %cst_24 = arith.constant dense<0xFF800000> : vector<16xf32>
    %53 = vector.multi_reduction <maximumf>, %52, %cst_24 [1] : vector<16x16xf32> to vector<16xf32>
    %54 = vector.shape_cast %53 : vector<16xf32> to vector<16x1xf32>
    %55 = vector.broadcast %54 : vector<16x1xf32> to vector<16x16xf32>
    %56 = arith.subf %52, %55 : vector<16x16xf32>
    %57 = math.exp %56 : vector<16x16xf32>
    %cst_25 = arith.constant dense<0.000000e+00> : vector<16xf32>
    %58 = vector.multi_reduction <add>, %57, %cst_25 [1] : vector<16x16xf32> to vector<16xf32>
    %59 = vector.shape_cast %58 : vector<16xf32> to vector<16x1xf32>
    %60 = vector.broadcast %59 : vector<16x1xf32> to vector<16x16xf32>
    %61 = arith.divf %57, %60 : vector<16x16xf32>
    %cst_26 = arith.constant dense<0.000000e+00> : vector<16x32xf32>
    %62 = tpu.matmul %61, %49, %cst_26 {dimension_numbers = #tpu.dot_dimension_numbers<[1], [0], [0], [1], [0, 0, 1, 1], [], []>} : vector<16x16xf32>, vector<16x32xf32>, vector<16x32xf32> -> vector<16x32xf32>
    %63 = vector.extract_strided_slice %26 {offsets = [32, 0], sizes = [32, 128], strides = [1, 1]} : vector<128x128xf32> to vector<32x128xf32>
    %cst_27 = arith.constant dense<0.000000e+00> : vector<16x128xf32>
    %64 = tpu.matmul %62, %63, %cst_27 {dimension_numbers = #tpu.dot_dimension_numbers<[1], [0], [0], [1], [0, 0, 1, 1], [], []>} : vector<16x32xf32>, vector<32x128xf32>, vector<16x128xf32> -> vector<16x128xf32>
    %65 = arith.addf %46, %64 : vector<16x128xf32>
    %66 = vector.extract_strided_slice %25 {offsets = [0, 64], sizes = [16, 32], strides = [1, 1]} : vector<16x384xf32> to vector<16x32xf32>
    %67 = vector.extract_strided_slice %25 {offsets = [0, 192], sizes = [16, 32], strides = [1, 1]} : vector<16x384xf32> to vector<16x32xf32>
    %68 = vector.extract_strided_slice %25 {offsets = [0, 320], sizes = [16, 32], strides = [1, 1]} : vector<16x384xf32> to vector<16x32xf32>
    %cst_28 = arith.constant dense<0.000000e+00> : vector<16x16xf32>
    %69 = tpu.matmul %66, %67, %cst_28 {dimension_numbers = #tpu.dot_dimension_numbers<[1], [1], [0], [0], [0, 0, 1, 0], [], []>} : vector<16x32xf32>, vector<16x32xf32>, vector<16x16xf32> -> vector<16x16xf32>
    %cst_29 = arith.constant 0.176776692 : f32
    %70 = vector.broadcast %cst_29 : f32 to vector<16x16xf32>
    %71 = arith.mulf %69, %70 : vector<16x16xf32>
    %cst_30 = arith.constant dense<0xFF800000> : vector<16xf32>
    %72 = vector.multi_reduction <maximumf>, %71, %cst_30 [1] : vector<16x16xf32> to vector<16xf32>
    %73 = vector.shape_cast %72 : vector<16xf32> to vector<16x1xf32>
    %74 = vector.broadcast %73 : vector<16x1xf32> to vector<16x16xf32>
    %75 = arith.subf %71, %74 : vector<16x16xf32>
    %76 = math.exp %75 : vector<16x16xf32>
    %cst_31 = arith.constant dense<0.000000e+00> : vector<16xf32>
    %77 = vector.multi_reduction <add>, %76, %cst_31 [1] : vector<16x16xf32> to vector<16xf32>
    %78 = vector.shape_cast %77 : vector<16xf32> to vector<16x1xf32>
    %79 = vector.broadcast %78 : vector<16x1xf32> to vector<16x16xf32>
    %80 = arith.divf %76, %79 : vector<16x16xf32>
    %cst_32 = arith.constant dense<0.000000e+00> : vector<16x32xf32>
    %81 = tpu.matmul %80, %68, %cst_32 {dimension_numbers = #tpu.dot_dimension_numbers<[1], [0], [0], [1], [0, 0, 1, 1], [], []>} : vector<16x16xf32>, vector<16x32xf32>, vector<16x32xf32> -> vector<16x32xf32>
    %82 = vector.extract_strided_slice %26 {offsets = [64, 0], sizes = [32, 128], strides = [1, 1]} : vector<128x128xf32> to vector<32x128xf32>
    %cst_33 = arith.constant dense<0.000000e+00> : vector<16x128xf32>
    %83 = tpu.matmul %81, %82, %cst_33 {dimension_numbers = #tpu.dot_dimension_numbers<[1], [0], [0], [1], [0, 0, 1, 1], [], []>} : vector<16x32xf32>, vector<32x128xf32>, vector<16x128xf32> -> vector<16x128xf32>
    %84 = arith.addf %65, %83 : vector<16x128xf32>
    %85 = vector.extract_strided_slice %25 {offsets = [0, 96], sizes = [16, 32], strides = [1, 1]} : vector<16x384xf32> to vector<16x32xf32>
    %86 = vector.extract_strided_slice %25 {offsets = [0, 224], sizes = [16, 32], strides = [1, 1]} : vector<16x384xf32> to vector<16x32xf32>
    %87 = vector.extract_strided_slice %25 {offsets = [0, 352], sizes = [16, 32], strides = [1, 1]} : vector<16x384xf32> to vector<16x32xf32>
    %cst_34 = arith.constant dense<0.000000e+00> : vector<16x16xf32>
    %88 = tpu.matmul %85, %86, %cst_34 {dimension_numbers = #tpu.dot_dimension_numbers<[1], [1], [0], [0], [0, 0, 1, 0], [], []>} : vector<16x32xf32>, vector<16x32xf32>, vector<16x16xf32> -> vector<16x16xf32>
    %cst_35 = arith.constant 0.176776692 : f32
    %89 = vector.broadcast %cst_35 : f32 to vector<16x16xf32>
    %90 = arith.mulf %88, %89 : vector<16x16xf32>
    %cst_36 = arith.constant dense<0xFF800000> : vector<16xf32>
    %91 = vector.multi_reduction <maximumf>, %90, %cst_36 [1] : vector<16x16xf32> to vector<16xf32>
    %92 = vector.shape_cast %91 : vector<16xf32> to vector<16x1xf32>
    %93 = vector.broadcast %92 : vector<16x1xf32> to vector<16x16xf32>
    %94 = arith.subf %90, %93 : vector<16x16xf32>
    %95 = math.exp %94 : vector<16x16xf32>
    %cst_37 = arith.constant dense<0.000000e+00> : vector<16xf32>
    %96 = vector.multi_reduction <add>, %95, %cst_37 [1] : vector<16x16xf32> to vector<16xf32>
    %97 = vector.shape_cast %96 : vector<16xf32> to vector<16x1xf32>
    %98 = vector.broadcast %97 : vector<16x1xf32> to vector<16x16xf32>
    %99 = arith.divf %95, %98 : vector<16x16xf32>
    %cst_38 = arith.constant dense<0.000000e+00> : vector<16x32xf32>
    %100 = tpu.matmul %99, %87, %cst_38 {dimension_numbers = #tpu.dot_dimension_numbers<[1], [0], [0], [1], [0, 0, 1, 1], [], []>} : vector<16x16xf32>, vector<16x32xf32>, vector<16x32xf32> -> vector<16x32xf32>
    %101 = vector.extract_strided_slice %26 {offsets = [96, 0], sizes = [32, 128], strides = [1, 1]} : vector<128x128xf32> to vector<32x128xf32>
    %cst_39 = arith.constant dense<0.000000e+00> : vector<16x128xf32>
    %102 = tpu.matmul %100, %101, %cst_39 {dimension_numbers = #tpu.dot_dimension_numbers<[1], [0], [0], [1], [0, 0, 1, 1], [], []>} : vector<16x32xf32>, vector<32x128xf32>, vector<16x128xf32> -> vector<16x128xf32>
    %103 = arith.addf %84, %102 : vector<16x128xf32>
    %104 = arith.addf %1, %103 : vector<16x128xf32>
    %c0_40 = arith.constant 0 : index
    %c0_41 = arith.constant 0 : index
    %105 = vector.load %arg6[%c0_40, %c0_41] : memref<1x128xf32, #tpu.memory_space<vmem>>, vector<1x128xf32>
    %106 = vector.broadcast %105 : vector<1x128xf32> to vector<16x128xf32>
    %107 = arith.addf %104, %106 : vector<16x128xf32>
    %c0_42 = arith.constant 0 : index
    %c0_43 = arith.constant 0 : index
    %108 = vector.load %arg7[%c0_42, %c0_43] : memref<1x128xf32, #tpu.memory_space<vmem>>, vector<1x128xf32>
    %c0_44 = arith.constant 0 : index
    %c0_45 = arith.constant 0 : index
    %109 = vector.load %arg8[%c0_44, %c0_45] : memref<1x128xf32, #tpu.memory_space<vmem>>, vector<1x128xf32>
    %cst_46 = arith.constant dense<0.000000e+00> : vector<16xf32>
    %110 = vector.multi_reduction <add>, %107, %cst_46 [1] : vector<16x128xf32> to vector<16xf32>
    %111 = vector.shape_cast %110 : vector<16xf32> to vector<16x1xf32>
    %cst_47 = arith.constant 1.280000e+02 : f32
    %112 = vector.broadcast %cst_47 : f32 to vector<16x1xf32>
    %113 = arith.divf %111, %112 : vector<16x1xf32>
    %114 = vector.broadcast %113 : vector<16x1xf32> to vector<16x128xf32>
    %115 = arith.subf %107, %114 : vector<16x128xf32>
    %116 = arith.mulf %115, %115 : vector<16x128xf32>
    %cst_48 = arith.constant dense<0.000000e+00> : vector<16xf32>
    %117 = vector.multi_reduction <add>, %116, %cst_48 [1] : vector<16x128xf32> to vector<16xf32>
    %118 = vector.shape_cast %117 : vector<16xf32> to vector<16x1xf32>
    %cst_49 = arith.constant 1.280000e+02 : f32
    %119 = vector.broadcast %cst_49 : f32 to vector<16x1xf32>
    %120 = arith.divf %118, %119 : vector<16x1xf32>
    %cst_50 = arith.constant 9.99999974E-6 : f32
    %121 = vector.broadcast %cst_50 : f32 to vector<16x1xf32>
    %122 = arith.addf %120, %121 : vector<16x1xf32>
    %123 = math.rsqrt %122 : vector<16x1xf32>
    %124 = vector.broadcast %123 : vector<16x1xf32> to vector<16x128xf32>
    %125 = arith.mulf %115, %124 : vector<16x128xf32>
    %126 = vector.broadcast %108 : vector<1x128xf32> to vector<16x128xf32>
    %127 = arith.mulf %125, %126 : vector<16x128xf32>
    %128 = vector.broadcast %109 : vector<1x128xf32> to vector<16x128xf32>
    %129 = arith.addf %127, %128 : vector<16x128xf32>
    %c0_51 = arith.constant 0 : index
    %c0_52 = arith.constant 0 : index
    %130 = vector.load %arg9[%c0_51, %c0_52] : memref<128x512xf32, #tpu.memory_space<vmem>>, vector<128x512xf32>
    %cst_53 = arith.constant dense<0.000000e+00> : vector<16x512xf32>
    %131 = tpu.matmul %129, %130, %cst_53 {dimension_numbers = #tpu.dot_dimension_numbers<[1], [0], [0], [1], [0, 0, 1, 1], [], []>} : vector<16x128xf32>, vector<128x512xf32>, vector<16x512xf32> -> vector<16x512xf32>
    %c0_54 = arith.constant 0 : index
    %c0_55 = arith.constant 0 : index
    %132 = vector.load %arg10[%c0_54, %c0_55] : memref<1x512xf32, #tpu.memory_space<vmem>>, vector<1x512xf32>
    %133 = vector.broadcast %132 : vector<1x512xf32> to vector<16x512xf32>
    %134 = arith.addf %131, %133 : vector<16x512xf32>
    %cst_56 = arith.constant 5.000000e-01 : f32
    %135 = vector.broadcast %cst_56 : f32 to vector<16x512xf32>
    %136 = arith.mulf %135, %134 : vector<16x512xf32>
    %cst_57 = arith.constant 0.707106769 : f32
    %137 = vector.broadcast %cst_57 : f32 to vector<16x512xf32>
    %138 = arith.mulf %134, %137 : vector<16x512xf32>
    %cst_58 = arith.constant 0.000000e+00 : f32
    %139 = vector.broadcast %cst_58 : f32 to vector<16x512xf32>
    %140 = arith.cmpf oge, %138, %139 : vector<16x512xf32>
    %cst_59 = arith.constant 1.000000e+00 : f32
    %cst_60 = arith.constant -1.000000e+00 : f32
    %141 = vector.broadcast %cst_59 : f32 to vector<16x512xf32>
    %142 = vector.broadcast %cst_60 : f32 to vector<16x512xf32>
    %143 = arith.select %140, %141, %142 : vector<16x512xi1>, vector<16x512xf32>
    %144 = math.absf %138 : vector<16x512xf32>
    %cst_61 = arith.constant 0.327591091 : f32
    %145 = vector.broadcast %cst_61 : f32 to vector<16x512xf32>
    %146 = arith.mulf %145, %144 : vector<16x512xf32>
    %cst_62 = arith.constant 1.000000e+00 : f32
    %147 = vector.broadcast %cst_62 : f32 to vector<16x512xf32>
    %148 = arith.addf %147, %146 : vector<16x512xf32>
    %cst_63 = arith.constant 1.000000e+00 : f32
    %149 = vector.broadcast %cst_63 : f32 to vector<16x512xf32>
    %150 = arith.divf %149, %148 : vector<16x512xf32>
    %cst_64 = arith.constant 1.06140542 : f32
    %151 = vector.broadcast %cst_64 : f32 to vector<16x512xf32>
    %152 = arith.mulf %150, %151 : vector<16x512xf32>
    %cst_65 = arith.constant -1.45315206 : f32
    %153 = vector.broadcast %cst_65 : f32 to vector<16x512xf32>
    %154 = arith.addf %153, %152 : vector<16x512xf32>
    %155 = arith.mulf %150, %154 : vector<16x512xf32>
    %cst_66 = arith.constant 1.42141378 : f32
    %156 = vector.broadcast %cst_66 : f32 to vector<16x512xf32>
    %157 = arith.addf %156, %155 : vector<16x512xf32>
    %158 = arith.mulf %150, %157 : vector<16x512xf32>
    %cst_67 = arith.constant -0.284496725 : f32
    %159 = vector.broadcast %cst_67 : f32 to vector<16x512xf32>
    %160 = arith.addf %159, %158 : vector<16x512xf32>
    %161 = arith.mulf %150, %160 : vector<16x512xf32>
    %cst_68 = arith.constant 0.254829586 : f32
    %162 = vector.broadcast %cst_68 : f32 to vector<16x512xf32>
    %163 = arith.addf %162, %161 : vector<16x512xf32>
    %164 = arith.mulf %150, %163 : vector<16x512xf32>
    %cst_69 = arith.constant 0.000000e+00 : f32
    %165 = vector.broadcast %cst_69 : f32 to vector<16x512xf32>
    %166 = arith.subf %165, %144 : vector<16x512xf32>
    %167 = arith.mulf %166, %144 : vector<16x512xf32>
    %168 = math.exp %167 : vector<16x512xf32>
    %169 = arith.mulf %164, %168 : vector<16x512xf32>
    %cst_70 = arith.constant 1.000000e+00 : f32
    %170 = vector.broadcast %cst_70 : f32 to vector<16x512xf32>
    %171 = arith.subf %170, %169 : vector<16x512xf32>
    %172 = arith.mulf %143, %171 : vector<16x512xf32>
    %cst_71 = arith.constant 1.000000e+00 : f32
    %173 = vector.broadcast %cst_71 : f32 to vector<16x512xf32>
    %174 = arith.addf %173, %172 : vector<16x512xf32>
    %175 = arith.mulf %136, %174 : vector<16x512xf32>
    %c0_72 = arith.constant 0 : index
    %c0_73 = arith.constant 0 : index
    %176 = vector.load %arg11[%c0_72, %c0_73] : memref<512x128xf32, #tpu.memory_space<vmem>>, vector<512x128xf32>
    %cst_74 = arith.constant dense<0.000000e+00> : vector<16x128xf32>
    %177 = tpu.matmul %175, %176, %cst_74 {dimension_numbers = #tpu.dot_dimension_numbers<[1], [0], [0], [1], [0, 0, 1, 1], [], []>} : vector<16x512xf32>, vector<512x128xf32>, vector<16x128xf32> -> vector<16x128xf32>
    %c0_75 = arith.constant 0 : index
    %c0_76 = arith.constant 0 : index
    %178 = vector.load %arg12[%c0_75, %c0_76] : memref<1x128xf32, #tpu.memory_space<vmem>>, vector<1x128xf32>
    %179 = vector.broadcast %178 : vector<1x128xf32> to vector<16x128xf32>
    %180 = arith.addf %177, %179 : vector<16x128xf32>
    %181 = arith.addf %107, %180 : vector<16x128xf32>
    %c0_77 = arith.constant 0 : index
    %c0_78 = arith.constant 0 : index
    %c0_79 = arith.constant 0 : index
    %182 = vector.load %arg13[%c0_77, %c0_78, %c0_79] : memref<1x16x128xf32, #tpu.memory_space<vmem>>, vector<1x16x128xf32>
    %183 = vector.shape_cast %182 : vector<1x16x128xf32> to vector<16x128xf32>
    %184 = vector.shape_cast %181 : vector<16x128xf32> to vector<1x16x128xf32>
    tpu.vector_store %arg13[%c0_77, %c0_78, %c0_79], %184 {strides = array<i32>} : memref<1x16x128xf32, #tpu.memory_space<vmem>>, vector<1x16x128xf32>,
    return
  }
  func.func @transform_0(%arg0: i32) -> (i32, i32, i32) {
    %c0_i32 = arith.constant 0 : i32
    %c0_i32_0 = arith.constant 0 : i32
    %c0_i32_1 = arith.constant 0 : i32
    return %arg0, %c0_i32, %c0_i32_0 : i32, i32, i32
  }
  func.func @transform_1(%arg0: i32) -> (i32, i32) {
    %c0_i32 = arith.constant 0 : i32
    %c0_i32_0 = arith.constant 0 : i32
    %c0_i32_1 = arith.constant 0 : i32
    return %c0_i32, %c0_i32_0 : i32, i32
  }
  func.func @transform_2(%arg0: i32) -> (i32, i32) {
    %c0_i32 = arith.constant 0 : i32
    %c0_i32_0 = arith.constant 0 : i32
    %c0_i32_1 = arith.constant 0 : i32
    return %c0_i32, %c0_i32_0 : i32, i32
  }
  func.func @transform_3(%arg0: i32) -> (i32, i32) {
    %c0_i32 = arith.constant 0 : i32
    %c0_i32_0 = arith.constant 0 : i32
    %c0_i32_1 = arith.constant 0 : i32
    return %c0_i32, %c0_i32_0 : i32, i32
  }
  func.func @transform_4(%arg0: i32) -> (i32, i32) {
    %c0_i32 = arith.constant 0 : i32
    %c0_i32_0 = arith.constant 0 : i32
    %c0_i32_1 = arith.constant 0 : i32
    return %c0_i32, %c0_i32_0 : i32, i32
  }
  func.func @transform_5(%arg0: i32) -> (i32, i32) {
    %c0_i32 = arith.constant 0 : i32
    %c0_i32_0 = arith.constant 0 : i32
    %c0_i32_1 = arith.constant 0 : i32
    return %c0_i32, %c0_i32_0 : i32, i32
  }
  func.func @transform_6(%arg0: i32) -> (i32, i32) {
    %c0_i32 = arith.constant 0 : i32
    %c0_i32_0 = arith.constant 0 : i32
    %c0_i32_1 = arith.constant 0 : i32
    return %c0_i32, %c0_i32_0 : i32, i32
  }
  func.func @transform_7(%arg0: i32) -> (i32, i32) {
    %c0_i32 = arith.constant 0 : i32
    %c0_i32_0 = arith.constant 0 : i32
    %c0_i32_1 = arith.constant 0 : i32
    return %c0_i32, %c0_i32_0 : i32, i32
  }
  func.func @transform_8(%arg0: i32) -> (i32, i32) {
    %c0_i32 = arith.constant 0 : i32
    %c0_i32_0 = arith.constant 0 : i32
    %c0_i32_1 = arith.constant 0 : i32
    return %c0_i32, %c0_i32_0 : i32, i32
  }
  func.func @transform_9(%arg0: i32) -> (i32, i32) {
    %c0_i32 = arith.constant 0 : i32
    %c0_i32_0 = arith.constant 0 : i32
    %c0_i32_1 = arith.constant 0 : i32
    return %c0_i32, %c0_i32_0 : i32, i32
  }
  func.func @transform_10(%arg0: i32) -> (i32, i32) {
    %c0_i32 = arith.constant 0 : i32
    %c0_i32_0 = arith.constant 0 : i32
    %c0_i32_1 = arith.constant 0 : i32
    return %c0_i32, %c0_i32_0 : i32, i32
  }
  func.func @transform_11(%arg0: i32) -> (i32, i32) {
    %c0_i32 = arith.constant 0 : i32
    %c0_i32_0 = arith.constant 0 : i32
    %c0_i32_1 = arith.constant 0 : i32
    return %c0_i32, %c0_i32_0 : i32, i32
  }
  func.func @transform_12(%arg0: i32) -> (i32, i32, i32) {
    %c0_i32 = arith.constant 0 : i32
    %c0_i32_0 = arith.constant 0 : i32
    %c0_i32_1 = arith.constant 0 : i32
    return %arg0, %c0_i32, %c0_i32_0 : i32, i32, i32
  }
}

</mosaic_0001>

<llo_original>
// kernel: tpu_custom_call.1
$region0: #{tpu_custom_call.1}
  #allocation0 [shape = 'u32[]', space=smem, size = 0x4, offset = 0x4, fixed_abs, tag = 'smem constant byte address 0x4 - core index']
  #allocation1 [shape = 'u32[72,128]{1,0:T(1,128)}', space=vmem, size = 0x9000, scoped, tag = 'internal scratch']
  %s0 = inlined_call_operand.hbm [shape: f32[2,16,128], index: 0, kind: input, shape index: {}]
  %s1 = inlined_call_operand.hbm [shape: f32[1,128], index: 1, kind: input, shape index: {}]
  %s2 = inlined_call_operand.vmem [shape: f32[1,128], index: 2, kind: input, shape index: {}]
  %s3 = inlined_call_operand.hbm [shape: f32[128,384], index: 3, kind: input, shape index: {}]
  %s4 = inlined_call_operand.hbm [shape: f32[128,128], index: 4, kind: input, shape index: {}]
  %s5 = inlined_call_operand.vmem [shape: f32[1,128], index: 5, kind: input, shape index: {}]
  %s6 = inlined_call_operand.vmem [shape: f32[1,128], index: 6, kind: input, shape index: {}]
  %s7 = inlined_call_operand.hbm [shape: f32[1,128], index: 7, kind: input, shape index: {}]
  %s8 = inlined_call_operand.hbm [shape: f32[128,512], index: 8, kind: input, shape index: {}]
  %s9 = inlined_call_operand.vmem [shape: f32[1,512], index: 9, kind: input, shape index: {}]
  %s10 = inlined_call_operand.hbm [shape: f32[512,128], index: 10, kind: input, shape index: {}]
  %s11 = inlined_call_operand.vmem [shape: f32[1,128], index: 11, kind: input, shape index: {}]
  %s12 = inlined_call_operand.hbm [shape: f32[2,16,128], index: 12, kind: output, shape index: {}]
  %s13 = sld [smem:[#allocation0]]
  $region109: #{tpu_custom_call.1} parent=0
    _
  %s15 = ssub.s32 1, %s13
  %s16 = scalar_select 0, %s15, %s13
  $region1: #{tpu_custom_call.1} parent=0
    #allocation2 [shape = 'u8[16384]{0}', space=vmem, size = 0x4000, scoped, tag = 'input window, operand 0']
    #allocation3 [shape = 's32[2]{0}', space=sflag, size = 0x8, scoped, tag = 'scoped memory for tpu_custom_call.1']
    #allocation4 [shape = 's32[2]{0}', space=sflag, size = 0x8, scoped, tag = 'scoped memory for tpu_custom_call.1']
    #allocation5 [shape = 'u8[512]{0}', space=vmem, size = 0x400, scoped, tag = 'input window, operand 1, single buffered']
    #allocation6 [shape = 's32[1]{0}', space=sflag, size = 0x4, scoped, tag = 'scoped memory for tpu_custom_call.1']
    #allocation7 [shape = 'u8[196608]{0}', space=vmem, size = 0x30000, scoped, tag = 'input window, operand 3, single buffered']
    #allocation8 [shape = 'u8[65536]{0}', space=vmem, size = 0x10000, scoped, tag = 'input window, operand 4, single buffered']
    #allocation9 [shape = 's32[1]{0}', space=sflag, size = 0x4, scoped, tag = 'scoped memory for tpu_custom_call.1']
    #allocation10 [shape = 'u8[512]{0}', space=vmem, size = 0x400, scoped, tag = 'input window, operand 7, single buffered']
    #allocation11 [shape = 'u8[262144]{0}', space=vmem, size = 0x40000, scoped, tag = 'input window, operand 8, single buffered']
    #allocation12 [shape = 's32[1]{0}', space=sflag, size = 0x4, scoped, tag = 'scoped memory for tpu_custom_call.1']
    #allocation13 [shape = 'u8[262144]{0}', space=vmem, size = 0x40000, scoped, tag = 'input window, operand 10, single buffered']
    #allocation14 [shape = 'u8[16384]{0}', space=vmem, size = 0x4000, scoped, tag = 'output window, operand 0']
    %17 = vsyncpa [#allocation3], 0
    %s18 = scalar_lea.sflag [#allocation3], 1
    %19 = vsyncpa %s18, 0
    %20 = vsyncpa [#allocation6], 0
    %21 = vsyncpa [#allocation9], 0
    %22 = vsyncpa [#allocation12], 0
    %23 = vsyncpa [#allocation4], 0
    %s24 = scalar_lea.sflag [#allocation4], 1
    %25 = vsyncpa %s24, 0
    loop: start=0, step=1, limit=4
    $region2: #{tpu_custom_call.1} parent=1 // loop_pre_header
      _
    $region3: #{tpu_custom_call.1} parent=1 // loop_header
      %s27 = sphi 0, %s31
      %p28 = scmp.ge.s32.totalorder %s27, 4
      %s37 = sphi 0, %s39
      %s40 = sphi 0, %s37
      %s41 = sphi 0, %s40
      %s57 = sphi 0, %s41
      %s61 = sphi 0, %s61
      %s63 = sphi 0, %s61
      %s64 = sphi 0, %s63
      %s78 = sphi 0, %s64
      %s82 = sphi 0, %s82
      %s84 = sphi 0, %s82
      %s85 = sphi 0, %s84
      %s99 = sphi 0, %s85
      %s103 = sphi 0, %s103
      %s105 = sphi 0, %s103
      %s106 = sphi 0, %s105
      %s120 = sphi 0, %s106
      %s124 = sphi 0, %s124
      %s126 = sphi 0, %s124
      %s127 = sphi 0, %s126
      %s141 = sphi 0, %s127
      %s145 = sphi 0, %s145
      %s147 = sphi 0, %s145
      %s148 = sphi 0, %s147
      %s162 = sphi 0, %s148
      %s166 = sphi 0, %s166
      %s168 = sphi 0, %s166
      %s169 = sphi 0, %s168
      %s183 = sphi 0, %s169
      %s187 = sphi 0, %s187
      %s189 = sphi 0, %s187
      %s190 = sphi 0, %s189
      %s204 = sphi 0, %s190
      %s208 = sphi 0, %s208
      %s210 = sphi 0, %s208
      %s211 = sphi 0, %s210
      %s225 = sphi 0, %s211
      %s229 = sphi 0, %s229
      %s231 = sphi 0, %s229
      %s232 = sphi 0, %s231
      %s246 = sphi 0, %s232
      %s250 = sphi 0, %s250
      %s252 = sphi 0, %s250
      %s253 = sphi 0, %s252
      %s267 = sphi 0, %s253
      %s271 = sphi 0, %s271
      %s273 = sphi 0, %s271
      %s274 = sphi 0, %s273
      %s288 = sphi 0, %s274
      %s294 = sphi 0, %s296
      %s297 = sphi 0, %s294
      %s298 = sphi 0, %s297
      %s314 = sphi 0, %s298
    $region4: #{tpu_custom_call.1} parent=1 // loop_header_branch
      %30 = sbr.rel (%p28) target = $region8
    $region5: #{tpu_custom_call.1} parent=1 // loop_body
      %s32 = ssub.s32 %s27, 1
      %s33 = ssub.s32 %s27, 2
      %s34 = sadd.s32 %s27, 1
      %s35 = ssub.s32 %s27, %s34
      %p36 = scmp.eq.s32.totalorder %s35, 0
      %s38 = sadd.s32 %s37, 1
      %s39 = scalar_select %p36, %s37, %s38
      %p42 = pneg %p36
      %p43 = scmp.eq.s32.totalorder %s27, 1
      %p44 = por %p42, %p43
      %p45 = scmp.ne.s32.totalorder %s37, %s40
      %p46 = scmp.eq.s32.totalorder %s27, 0
      %p47 = por %p45, %p46
      %p48 = scmp.ne.s32.totalorder %s37, %s40
      %p49 = scmp.eq.s32.totalorder %s32, 1
      %p50 = por %p48, %p49
      %p51 = scmp.ne.s32.totalorder %s40, %s41
      %p52 = scmp.eq.s32.totalorder %s32, 0
      %p53 = por %p51, %p52
      %p54 = scmp.ne.s32.totalorder %s40, %s41
      %p55 = scmp.eq.s32.totalorder %s33, 1
      %p56 = por %p54, %p55
      %p58 = scmp.ne.s32.totalorder %s41, %s57
      %p59 = scmp.eq.s32.totalorder %s33, 0
      %p60 = por %p58, %p59
      %s62 = sadd.s32 %s61, 1
      %p65 = scmp.eq.s32.totalorder %s27, 1
      %p66 = scmp.ne.s32.totalorder %s61, %s63
      %p67 = scmp.eq.s32.totalorder %s27, 0
      %p68 = por %p66, %p67
      %p69 = scmp.ne.s32.totalorder %s61, %s63
      %p70 = scmp.eq.s32.totalorder %s32, 1
      %p71 = por %p69, %p70
      %p72 = scmp.ne.s32.totalorder %s63, %s64
      %p73 = scmp.eq.s32.totalorder %s32, 0
      %p74 = por %p72, %p73
      %p75 = scmp.ne.s32.totalorder %s63, %s64
      %p76 = scmp.eq.s32.totalorder %s33, 1
      %p77 = por %p75, %p76
      %p79 = scmp.ne.s32.totalorder %s64, %s78
      %p80 = scmp.eq.s32.totalorder %s33, 0
      %p81 = por %p79, %p80
      %s83 = sadd.s32 %s82, 1
      %p86 = scmp.eq.s32.totalorder %s27, 1
      %p87 = scmp.ne.s32.totalorder %s82, %s84
      %p88 = scmp.eq.s32.totalorder %s27, 0
      %p89 = por %p87, %p88
      %p90 = scmp.ne.s32.totalorder %s82, %s84
      %p91 = scmp.eq.s32.totalorder %s32, 1
      %p92 = por %p90, %p91
      %p93 = scmp.ne.s32.totalorder %s84, %s85
      %p94 = scmp.eq.s32.totalorder %s32, 0
      %p95 = por %p93, %p94
      %p96 = scmp.ne.s32.totalorder %s84, %s85
      %p97 = scmp.eq.s32.totalorder %s33, 1
      %p98 = por %p96, %p97
      %p100 = scmp.ne.s32.totalorder %s85, %s99
      %p101 = scmp.eq.s32.totalorder %s33, 0
      %p102 = por %p100, %p101
      %s104 = sadd.s32 %s103, 1
      %p107 = scmp.eq.s32.totalorder %s27, 1
      %p108 = scmp.ne.s32.totalorder %s103, %s105
      %p109 = scmp.eq.s32.totalorder %s27, 0
      %p110 = por %p108, %p109
      %p111 = scmp.ne.s32.totalorder %s103, %s105
      %p112 = scmp.eq.s32.totalorder %s32, 1
      %p113 = por %p111, %p112
      %p114 = scmp.ne.s32.totalorder %s105, %s106
      %p115 = scmp.eq.s32.totalorder %s32, 0
      %p116 = por %p114, %p115
      %p117 = scmp.ne.s32.totalorder %s105, %s106
      %p118 = scmp.eq.s32.totalorder %s33, 1
      %p119 = por %p117, %p118
      %p121 = scmp.ne.s32.totalorder %s106, %s120
      %p122 = scmp.eq.s32.totalorder %s33, 0
      %p123 = por %p121, %p122
      %s125 = sadd.s32 %s124, 1
      %p128 = scmp.eq.s32.totalorder %s27, 1
      %p129 = scmp.ne.s32.totalorder %s124, %s126
      %p130 = scmp.eq.s32.totalorder %s27, 0
      %p131 = por %p129, %p130
      %p132 = scmp.ne.s32.totalorder %s124, %s126
      %p133 = scmp.eq.s32.totalorder %s32, 1
      %p134 = por %p132, %p133
      %p135 = scmp.ne.s32.totalorder %s126, %s127
      %p136 = scmp.eq.s32.totalorder %s32, 0
      %p137 = por %p135, %p136
      %p138 = scmp.ne.s32.totalorder %s126, %s127
      %p139 = scmp.eq.s32.totalorder %s33, 1
      %p140 = por %p138, %p139
      %p142 = scmp.ne.s32.totalorder %s127, %s141
      %p143 = scmp.eq.s32.totalorder %s33, 0
      %p144 = por %p142, %p143
      %s146 = sadd.s32 %s145, 1
      %p149 = scmp.eq.s32.totalorder %s27, 1
      %p150 = scmp.ne.s32.totalorder %s145, %s147
      %p151 = scmp.eq.s32.totalorder %s27, 0
      %p152 = por %p150, %p151
      %p153 = scmp.ne.s32.totalorder %s145, %s147
      %p154 = scmp.eq.s32.totalorder %s32, 1
      %p155 = por %p153, %p154
      %p156 = scmp.ne.s32.totalorder %s147, %s148
      %p157 = scmp.eq.s32.totalorder %s32, 0
      %p158 = por %p156, %p157
      %p159 = scmp.ne.s32.totalorder %s147, %s148
      %p160 = scmp.eq.s32.totalorder %s33, 1
      %p161 = por %p159, %p160
      %p163 = scmp.ne.s32.totalorder %s148, %s162
      %p164 = scmp.eq.s32.totalorder %s33, 0
      %p165 = por %p163, %p164
      %s167 = sadd.s32 %s166, 1
      %p170 = scmp.eq.s32.totalorder %s27, 1
      %p171 = scmp.ne.s32.totalorder %s166, %s168
      %p172 = scmp.eq.s32.totalorder %s27, 0
      %p173 = por %p171, %p172
      %p174 = scmp.ne.s32.totalorder %s166, %s168
      %p175 = scmp.eq.s32.totalorder %s32, 1
      %p176 = por %p174, %p175
      %p177 = scmp.ne.s32.totalorder %s168, %s169
      %p178 = scmp.eq.s32.totalorder %s32, 0
      %p179 = por %p177, %p178
      %p180 = scmp.ne.s32.totalorder %s168, %s169
      %p181 = scmp.eq.s32.totalorder %s33, 1
      %p182 = por %p180, %p181
      %p184 = scmp.ne.s32.totalorder %s169, %s183
      %p185 = scmp.eq.s32.totalorder %s33, 0
      %p186 = por %p184, %p185
      %s188 = sadd.s32 %s187, 1
      %p191 = scmp.eq.s32.totalorder %s27, 1
      %p192 = scmp.ne.s32.totalorder %s187, %s189
      %p193 = scmp.eq.s32.totalorder %s27, 0
      %p194 = por %p192, %p193
      %p195 = scmp.ne.s32.totalorder %s187, %s189
      %p196 = scmp.eq.s32.totalorder %s32, 1
      %p197 = por %p195, %p196
      %p198 = scmp.ne.s32.totalorder %s189, %s190
      %p199 = scmp.eq.s32.totalorder %s32, 0
      %p200 = por %p198, %p199
      %p201 = scmp.ne.s32.totalorder %s189, %s190
      %p202 = scmp.eq.s32.totalorder %s33, 1
      %p203 = por %p201, %p202
      %p205 = scmp.ne.s32.totalorder %s190, %s204
      %p206 = scmp.eq.s32.totalorder %s33, 0
      %p207 = por %p205, %p206
      %s209 = sadd.s32 %s208, 1
      %p212 = scmp.eq.s32.totalorder %s27, 1
      %p213 = scmp.ne.s32.totalorder %s208, %s210
      %p214 = scmp.eq.s32.totalorder %s27, 0
      %p215 = por %p213, %p214
      %p216 = scmp.ne.s32.totalorder %s208, %s210
      %p217 = scmp.eq.s32.totalorder %s32, 1
      %p218 = por %p216, %p217
      %p219 = scmp.ne.s32.totalorder %s210, %s211
      %p220 = scmp.eq.s32.totalorder %s32, 0
      %p221 = por %p219, %p220
      %p222 = scmp.ne.s32.totalorder %s210, %s211
      %p223 = scmp.eq.s32.totalorder %s33, 1
      %p224 = por %p222, %p223
      %p226 = scmp.ne.s32.totalorder %s211, %s225
      %p227 = scmp.eq.s32.totalorder %s33, 0
      %p228 = por %p226, %p227
      %s230 = sadd.s32 %s229, 1
      %p233 = scmp.eq.s32.totalorder %s27, 1
      %p234 = scmp.ne.s32.totalorder %s229, %s231
      %p235 = scmp.eq.s32.totalorder %s27, 0
      %p236 = por %p234, %p235
      %p237 = scmp.ne.s32.totalorder %s229, %s231
      %p238 = scmp.eq.s32.totalorder %s32, 1
      %p239 = por %p237, %p238
      %p240 = scmp.ne.s32.totalorder %s231, %s232
      %p241 = scmp.eq.s32.totalorder %s32, 0
      %p242 = por %p240, %p241
      %p243 = scmp.ne.s32.totalorder %s231, %s232
      %p244 = scmp.eq.s32.totalorder %s33, 1
      %p245 = por %p243, %p244
      %p247 = scmp.ne.s32.totalorder %s232, %s246
      %p248 = scmp.eq.s32.totalorder %s33, 0
      %p249 = por %p247, %p248
      %s251 = sadd.s32 %s250, 1
      %p254 = scmp.eq.s32.totalorder %s27, 1
      %p255 = scmp.ne.s32.totalorder %s250, %s252
      %p256 = scmp.eq.s32.totalorder %s27, 0
      %p257 = por %p255, %p256
      %p258 = scmp.ne.s32.totalorder %s250, %s252
      %p259 = scmp.eq.s32.totalorder %s32, 1
      %p260 = por %p258, %p259
      %p261 = scmp.ne.s32.totalorder %s252, %s253
      %p262 = scmp.eq.s32.totalorder %s32, 0
      %p263 = por %p261, %p262
      %p264 = scmp.ne.s32.totalorder %s252, %s253
      %p265 = scmp.eq.s32.totalorder %s33, 1
      %p266 = por %p264, %p265
      %p268 = scmp.ne.s32.totalorder %s253, %s267
      %p269 = scmp.eq.s32.totalorder %s33, 0
      %p270 = por %p268, %p269
      %s272 = sadd.s32 %s271, 1
      %p275 = scmp.eq.s32.totalorder %s27, 1
      %p276 = scmp.ne.s32.totalorder %s271, %s273
      %p277 = scmp.eq.s32.totalorder %s27, 0
      %p278 = por %p276, %p277
      %p279 = scmp.ne.s32.totalorder %s271, %s273
      %p280 = scmp.eq.s32.totalorder %s32, 1
      %p281 = por %p279, %p280
      %p282 = scmp.ne.s32.totalorder %s273, %s274
      %p283 = scmp.eq.s32.totalorder %s32, 0
      %p284 = por %p282, %p283
      %p285 = scmp.ne.s32.totalorder %s273, %s274
      %p286 = scmp.eq.s32.totalorder %s33, 1
      %p287 = por %p285, %p286
      %p289 = scmp.ne.s32.totalorder %s274, %s288
      %p290 = scmp.eq.s32.totalorder %s33, 0
      %p291 = por %p289, %p290
      %s292 = ssub.s32 %s27, %s34
      %p293 = scmp.eq.s32.totalorder %s292, 0
      %s295 = sadd.s32 %s294, 1
      %s296 = scalar_select %p293, %s294, %s295
      %p299 = pneg %p293
      %p300 = scmp.eq.s32.totalorder %s27, 1
      %p301 = por %p299, %p300
      %p302 = scmp.ne.s32.totalorder %s294, %s297
      %p303 = scmp.eq.s32.totalorder %s27, 0
      %p304 = por %p302, %p303
      %p305 = scmp.ne.s32.totalorder %s294, %s297
      %p306 = scmp.eq.s32.totalorder %s32, 1
      %p307 = por %p305, %p306
      %p308 = scmp.ne.s32.totalorder %s297, %s298
      %p309 = scmp.eq.s32.totalorder %s32, 0
      %p310 = por %p308, %p309
      %p311 = scmp.ne.s32.totalorder %s297, %s298
      %p312 = scmp.eq.s32.totalorder %s33, 1
      %p313 = por %p311, %p312
      %p315 = scmp.ne.s32.totalorder %s298, %s314
      %p316 = scmp.eq.s32.totalorder %s33, 0
      %p317 = por %p315, %p316
      %p318 = scmp.le.s32.totalorder 1, %s27
      %p319 = scmp.lt.s32.totalorder %s27, 3
      %p320 = pnand %p318, %p319
      %p321 = pneg %p320
      // Predicated region
      $region9: #{tpu_custom_call.1} parent=5 // pred_check
        _
      $region10: #{tpu_custom_call.1} parent=5 // pred_check_branch
        %323 = sbr.rel (%p320) target = $region12
      $region11: #{tpu_custom_call.1} parent=5 // pred_region
        %s324 = ssub.s32 %s27, 1
        // Predicated region
        $region13: #{tpu_custom_call.1} parent=11 // pred_check
          %p325 = pneg %p74
        $region14: #{tpu_custom_call.1} parent=11 // pred_check_branch
          %327 = sbr.rel (%p325) target = $region16
        $region15: #{tpu_custom_call.1} parent=11 // pred_region
          %329 = vsyncadd [#allocation6], 0
          %s331 = sshll.u32 %s1, 4
          %s332 = int_to_ptr.hbm [resolvable:$true] %s331
          %s333 = sshll.u32 [#allocation5], 4
          %s334 = int_to_ptr.vmem [resolvable:$true] %s333
          %336 = dma.hbm_to_vmem [thread:$0]  %s332, 16, %s334, [#allocation6]
        $region16: #{tpu_custom_call.1} parent=11 // pred_fallthru
          _
        // Predicated region
        $region17: #{tpu_custom_call.1} parent=11 // pred_check
          %p337 = pneg %p95
        $region18: #{tpu_custom_call.1} parent=11 // pred_check_branch
          %339 = sbr.rel (%p337) target = $region20
        $region19: #{tpu_custom_call.1} parent=11 // pred_region
          _
        $region20: #{tpu_custom_call.1} parent=11 // pred_fallthru
          _
        // Predicated region
        $region21: #{tpu_custom_call.1} parent=11 // pred_check
          %p340 = pneg %p116
        $region22: #{tpu_custom_call.1} parent=11 // pred_check_branch
          %342 = sbr.rel (%p340) target = $region24
        $region23: #{tpu_custom_call.1} parent=11 // pred_region
          %344 = vsyncadd [#allocation6], 0
          %s345 = sshll.u32 %s3, 4
          %s346 = int_to_ptr.hbm [resolvable:$true] %s345
          %s347 = sshll.u32 [#allocation7], 4
          %s348 = int_to_ptr.vmem [resolvable:$true] %s347
          %353 = dma.hbm_to_vmem [thread:$0]  %s346, 6144, %s348, [#allocation6], 384, 384, 24
        $region24: #{tpu_custom_call.1} parent=11 // pred_fallthru
          _
        // Predicated region
        $region25: #{tpu_custom_call.1} parent=11 // pred_check
          %p354 = pneg %p137
        $region26: #{tpu_custom_call.1} parent=11 // pred_check_branch
          %356 = sbr.rel (%p354) target = $region28
        $region27: #{tpu_custom_call.1} parent=11 // pred_region
          %358 = vsyncadd [#allocation9], 0
          %s359 = sshll.u32 %s4, 4
          %s360 = int_to_ptr.hbm [resolvable:$true] %s359
          %s361 = sshll.u32 [#allocation8], 4
          %s362 = int_to_ptr.vmem [resolvable:$true] %s361
          %367 = dma.hbm_to_vmem [thread:$0]  %s360, 2048, %s362, [#allocation9], 128, 128, 8
        $region28: #{tpu_custom_call.1} parent=11 // pred_fallthru
          _
        // Predicated region
        $region29: #{tpu_custom_call.1} parent=11 // pred_check
          %p368 = pneg %p158
        $region30: #{tpu_custom_call.1} parent=11 // pred_check_branch
          %370 = sbr.rel (%p368) target = $region32
        $region31: #{tpu_custom_call.1} parent=11 // pred_region
          _
        $region32: #{tpu_custom_call.1} parent=11 // pred_fallthru
          _
        // Predicated region
        $region33: #{tpu_custom_call.1} parent=11 // pred_check
          %p371 = pneg %p179
        $region34: #{tpu_custom_call.1} parent=11 // pred_check_branch
          %373 = sbr.rel (%p371) target = $region36
        $region35: #{tpu_custom_call.1} parent=11 // pred_region
          _
        $region36: #{tpu_custom_call.1} parent=11 // pred_fallthru
          _
        // Predicated region
        $region37: #{tpu_custom_call.1} parent=11 // pred_check
          %p374 = pneg %p200
        $region38: #{tpu_custom_call.1} parent=11 // pred_check_branch
          %376 = sbr.rel (%p374) target = $region40
        $region39: #{tpu_custom_call.1} parent=11 // pred_region
          %378 = vsyncadd [#allocation9], 0
          %s380 = sshll.u32 %s7, 4
          %s381 = int_to_ptr.hbm [resolvable:$true] %s380
          %s382 = sshll.u32 [#allocation10], 4
          %s383 = int_to_ptr.vmem [resolvable:$true] %s382
          %385 = dma.hbm_to_vmem [thread:$0]  %s381, 16, %s383, [#allocation9]
        $region40: #{tpu_custom_call.1} parent=11 // pred_fallthru
          _
        // Predicated region
        $region41: #{tpu_custom_call.1} parent=11 // pred_check
          %p386 = pneg %p221
        $region42: #{tpu_custom_call.1} parent=11 // pred_check_branch
          %388 = sbr.rel (%p386) target = $region44
        $region43: #{tpu_custom_call.1} parent=11 // pred_region
          %390 = vsyncadd [#allocation12], 0
          %s391 = sshll.u32 %s8, 4
          %s392 = int_to_ptr.hbm [resolvable:$true] %s391
          %s393 = sshll.u32 [#allocation11], 4
          %s394 = int_to_ptr.vmem [resolvable:$true] %s393
          %399 = dma.hbm_to_vmem [thread:$0]  %s392, 8192, %s394, [#allocation12], 512, 512, 32
        $region44: #{tpu_custom_call.1} parent=11 // pred_fallthru
          _
        // Predicated region
        $region45: #{tpu_custom_call.1} parent=11 // pred_check
          %p400 = pneg %p242
        $region46: #{tpu_custom_call.1} parent=11 // pred_check_branch
          %402 = sbr.rel (%p400) target = $region48
        $region47: #{tpu_custom_call.1} parent=11 // pred_region
          _
        $region48: #{tpu_custom_call.1} parent=11 // pred_fallthru
          _
        // Predicated region
        $region49: #{tpu_custom_call.1} parent=11 // pred_check
          %p403 = pneg %p263
        $region50: #{tpu_custom_call.1} parent=11 // pred_check_branch
          %405 = sbr.rel (%p403) target = $region52
        $region51: #{tpu_custom_call.1} parent=11 // pred_region
          %407 = vsyncadd [#allocation12], 0
          %s408 = sshll.u32 %s10, 4
          %s409 = int_to_ptr.hbm [resolvable:$true] %s408
          %s410 = sshll.u32 [#allocation13], 4
          %s411 = int_to_ptr.vmem [resolvable:$true] %s410
          %416 = dma.hbm_to_vmem [thread:$0]  %s409, 8192, %s411, [#allocation12], 128, 128, 8
        $region52: #{tpu_custom_call.1} parent=11 // pred_fallthru
          _
        // Predicated region
        $region53: #{tpu_custom_call.1} parent=11 // pred_check
          %p417 = pneg %p284
        $region54: #{tpu_custom_call.1} parent=11 // pred_check_branch
          %419 = sbr.rel (%p417) target = $region56
        $region55: #{tpu_custom_call.1} parent=11 // pred_region
          _
        $region56: #{tpu_custom_call.1} parent=11 // pred_fallthru
          _
      $region12: #{tpu_custom_call.1} parent=5 // pred_fallthru
        _
      %p420 = scmp.lt.s32.totalorder %s27, 2
      // Predicated region
      $region57: #{tpu_custom_call.1} parent=5 // pred_check
        %p421 = pneg %p420
      $region58: #{tpu_custom_call.1} parent=5 // pred_check_branch
        %423 = sbr.rel (%p421) target = $region60
      $region59: #{tpu_custom_call.1} parent=5 // pred_region
        // Predicated region
        $region61: #{tpu_custom_call.1} parent=59 // pred_check
          %p424 = pneg %p47
        $region62: #{tpu_custom_call.1} parent=59 // pred_check_branch
          %426 = sbr.rel (%p424) target = $region64
        $region63: #{tpu_custom_call.1} parent=59 // pred_region
          %s427 = sand.u32 %s37, 1
          %s428 = scalar_lea.sflag [#allocation3], %s427
          %s429 = sand.u32 %s37, 1
          %s430 = smul.addr %s429, 16
          %s431 = scalar_lea.vmem [#allocation2], %s430
          %433 = vsyncadd %s428, 0
          %s434 = smul.addr %s27, 2
          %s435 = smul.addr %s434, 8
          %s436 = scalar_lea.hbm %s0, %s435
          %s437 = sshll.u32 %s436, 4
          %s438 = int_to_ptr.hbm [resolvable:$true] %s437
          %s439 = sshll.u32 %s431, 4
          %s440 = int_to_ptr.vmem [resolvable:$true] %s439
          %445 = dma.hbm_to_vmem [thread:$0]  %s438, 256, %s440, %s428, 128, 128, 8
        $region64: #{tpu_custom_call.1} parent=59 // pred_fallthru
          _
      $region60: #{tpu_custom_call.1} parent=5 // pred_fallthru
        _
      %p446 = scmp.le.s32.totalorder 1, %s27
      %p447 = scmp.lt.s32.totalorder %s27, 3
      %p448 = pnand %p446, %p447
      %p449 = pneg %p448
      // Predicated region
      $region65: #{tpu_custom_call.1} parent=5 // pred_check
        _
      $region66: #{tpu_custom_call.1} parent=5 // pred_check_branch
        %451 = sbr.rel (%p448) target = $region68
      $region67: #{tpu_custom_call.1} parent=5 // pred_region
        %s452 = ssub.s32 %s27, 1
        %s453 = sand.u32 %s40, 1
        %s454 = scalar_lea.sflag [#allocation3], %s453
        %s455 = sand.u32 %s40, 1
        %s456 = smul.addr %s455, 16
        %s457 = scalar_lea.vmem [#allocation2], %s456
        // Predicated region
        $region69: #{tpu_custom_call.1} parent=67 // pred_check
          %p458 = pneg %p53
        $region70: #{tpu_custom_call.1} parent=67 // pred_check_branch
          %460 = sbr.rel (%p458) target = $region72
        $region71: #{tpu_custom_call.1} parent=67 // pred_region
          %462 = dma.done %s454, 256
        $region72: #{tpu_custom_call.1} parent=67 // pred_fallthru
          _
        // Predicated region
        $region73: #{tpu_custom_call.1} parent=67 // pred_check
          %p463 = pneg %p74
        $region74: #{tpu_custom_call.1} parent=67 // pred_check_branch
          %465 = sbr.rel (%p463) target = $region76
        $region75: #{tpu_custom_call.1} parent=67 // pred_region
          %467 = dma.done [#allocation6], 16
        $region76: #{tpu_custom_call.1} parent=67 // pred_fallthru
          _
        // Predicated region
        $region77: #{tpu_custom_call.1} parent=67 // pred_check
          %p468 = pneg %p116
        $region78: #{tpu_custom_call.1} parent=67 // pred_check_branch
          %470 = sbr.rel (%p468) target = $region80
        $region79: #{tpu_custom_call.1} parent=67 // pred_region
          %472 = dma.done [#allocation6], 6144
        $region80: #{tpu_custom_call.1} parent=67 // pred_fallthru
          _
        // Predicated region
        $region81: #{tpu_custom_call.1} parent=67 // pred_check
          %p473 = pneg %p137
        $region82: #{tpu_custom_call.1} parent=67 // pred_check_branch
          %475 = sbr.rel (%p473) target = $region84
        $region83: #{tpu_custom_call.1} parent=67 // pred_region
          %477 = dma.done [#allocation9], 2048
        $region84: #{tpu_custom_call.1} parent=67 // pred_fallthru
          _
        // Predicated region
        $region85: #{tpu_custom_call.1} parent=67 // pred_check
          %p478 = pneg %p200
        $region86: #{tpu_custom_call.1} parent=67 // pred_check_branch
          %480 = sbr.rel (%p478) target = $region88
        $region87: #{tpu_custom_call.1} parent=67 // pred_region
          %482 = dma.done [#allocation9], 16
        $region88: #{tpu_custom_call.1} parent=67 // pred_fallthru
          _
        // Predicated region
        $region89: #{tpu_custom_call.1} parent=67 // pred_check
          %p483 = pneg %p221
        $region90: #{tpu_custom_call.1} parent=67 // pred_check_branch
          %485 = sbr.rel (%p483) target = $region92
        $region91: #{tpu_custom_call.1} parent=67 // pred_region
          %487 = dma.done [#allocation12], 8192
        $region92: #{tpu_custom_call.1} parent=67 // pred_fallthru
          _
        // Predicated region
        $region93: #{tpu_custom_call.1} parent=67 // pred_check
          %p488 = pneg %p263
        $region94: #{tpu_custom_call.1} parent=67 // pred_check_branch
          %490 = sbr.rel (%p488) target = $region96
        $region95: #{tpu_custom_call.1} parent=67 // pred_region
          %492 = dma.done [#allocation12], 8192
        $region96: #{tpu_custom_call.1} parent=67 // pred_fallthru
          _
        %s493 = sand.u32 %s40, 1
        %s494 = scalar_lea.sflag [#allocation3], %s493
        %s495 = sand.u32 %s40, 1
        %s496 = smul.addr %s495, 16
        %s497 = scalar_lea.vmem [#allocation2], %s496
        %p498 = pneg %p53
        %p499 = pneg %p50
        %p500 = pneg %p74
        %p501 = pneg %p71
        %p502 = pneg %p95
        %p503 = pneg %p92
        %p504 = pneg %p116
        %p505 = pneg %p113
        %p506 = pneg %p137
        %p507 = pneg %p134
        %p508 = pneg %p158
        %p509 = pneg %p155
        %p510 = pneg %p179
        %p511 = pneg %p176
        %p512 = pneg %p200
        %p513 = pneg %p197
        %p514 = pneg %p221
        %p515 = pneg %p218
        %p516 = pneg %p242
        %p517 = pneg %p239
        %p518 = pneg %p263
        %p519 = pneg %p260
        %p520 = pneg %p284
        %p521 = pneg %p281
        %p522 = pneg %p310
        %p523 = pneg %p307
        %s524 = sand.u32 %s297, 1
        %s525 = scalar_lea.sflag [#allocation4], %s524
        %s526 = sand.u32 %s297, 1
        %s527 = smul.addr %s526, 16
        %s528 = scalar_lea.vmem [#allocation14], %s527
        %v529 = vld [vmem:[%s457] sm:$0xff]
        %v530 = vld [vmem:[%s457 + $0x8] sm:$0xff]
        %v531 = vld [vmem:[#allocation5] sm:$0x1]
        %v532 = vld [vmem:[%s2] sm:$0x1]
        %533 = vadd.xlane.f32.xlu0 %v529
        %v534 = vpop.xlane.xlu0 %533
        %535 = vadd.xlane.f32.xlu0 %v530
        %v536 = vpop.xlane.xlu0 %535
        %v537 = vrcp.pop 128.0
        %v538 = vmul.f32 128.0, %v537
        %v539 = vsub.f32 1.0, %v538
        %v540 = vmul.f32 %v537, %v539
        %v541 = vadd.f32 %v537, %v540
        %vm542 = vweird.f32 %v537
        %v543 = vsel %vm542, %v537, %v541
        %v544 = vmul.f32 %v534, %v543
        %v545 = vmul.f32 %v536, %v543
        %v546 = vsub.f32 %v529, %v544
        %v547 = vsub.f32 %v530, %v545
        %v548 = vmul.f32 %v546, %v546
        %v549 = vmul.f32 %v547, %v547
        %550 = vadd.xlane.f32.xlu0 %v548
        %v551 = vpop.xlane.xlu0 %550
        %552 = vadd.xlane.f32.xlu0 %v549
        %v553 = vpop.xlane.xlu0 %552
        %v554 = vmul.f32 %v551, %v543
        %v555 = vmul.f32 %v553, %v543
        %v556 = vadd.f32 %v554, 1e-05
        %v557 = vadd.f32 %v555, 1e-05
        %v558 = vrsqrt.pop %v556
        %v559 = vmul.f32 %v558, %v556
        %v560 = vmul.f32 %v559, %v558
        %v561 = vmul.f32 0.5, %v560
        %v562 = vsub.f32 1.5, %v561
        %v563 = vmul.f32 %v558, %v562
        %vm564 = vweird.f32 %v556
        %vm565 = vweird.f32 %v558
        %vm566 = vmor %vm564, %vm565
        %v567 = vsel %vm566, %v558, %v563
        %v568 = vrsqrt.pop %v557
        %v569 = vmul.f32 %v568, %v557
        %v570 = vmul.f32 %v569, %v568
        %v571 = vmul.f32 0.5, %v570
        %v572 = vsub.f32 1.5, %v571
        %v573 = vmul.f32 %v568, %v572
        %vm574 = vweird.f32 %v557
        %vm575 = vweird.f32 %v568
        %vm576 = vmor %vm574, %vm575
        %v577 = vsel %vm576, %v568, %v573
        %v578 = vmul.f32 %v546, %v567
        %v579 = vmul.f32 %v547, %v577
        %v581 = vperm.slane %v531, 0
        %v583 = vmul.f32 %v578, %v581
        %v584 = vmul.f32 %v579, %v581
        %v586 = vperm.slane %v532, 0
        %v588 = vadd.f32 %v583, %v586
        %v589 = vadd.f32 %v584, %v586
        %v590 = vld [vmem:[#allocation7] sm:$0xff]
        %v591 = vld [vmem:[#allocation7 + $0x8] sm:$0xff]
        %v592 = vld [vmem:[#allocation7 + $0x10] sm:$0xff]
        %v593 = vld [vmem:[#allocation7 + $0x18] sm:$0xff]
        %v594 = vld [vmem:[#allocation7 + $0x20] sm:$0xff]
        %v595 = vld [vmem:[#allocation7 + $0x28] sm:$0xff]
        %v596 = vld [vmem:[#allocation7 + $0x30] sm:$0xff]
        %v597 = vld [vmem:[#allocation7 + $0x38] sm:$0xff]
        %v598 = vld [vmem:[#allocation7 + $0x40] sm:$0xff]
        %v599 = vld [vmem:[#allocation7 + $0x48] sm:$0xff]
        %v600 = vld [vmem:[#allocation7 + $0x50] sm:$0xff]
        %v601 = vld [vmem:[#allocation7 + $0x58] sm:$0xff]
        %v602 = vld [vmem:[#allocation7 + $0x60] sm:$0xff]
        %v603 = vld [vmem:[#allocation7 + $0x68] sm:$0xff]
        %v604 = vld [vmem:[#allocation7 + $0x70] sm:$0xff]
        %v605 = vld [vmem:[#allocation7 + $0x78] sm:$0xff]
        %v606 = vld [vmem:[#allocation7 + $0x80] sm:$0xff]
        %v607 = vld [vmem:[#allocation7 + $0x88] sm:$0xff]
        %v608 = vld [vmem:[#allocation7 + $0x90] sm:$0xff]
        %v609 = vld [vmem:[#allocation7 + $0x98] sm:$0xff]
        %v610 = vld [vmem:[#allocation7 + $0xa0] sm:$0xff]
        %v611 = vld [vmem:[#allocation7 + $0xa8] sm:$0xff]
        %v612 = vld [vmem:[#allocation7 + $0xb0] sm:$0xff]
        %v613 = vld [vmem:[#allocation7 + $0xb8] sm:$0xff]
        %v614 = vld [vmem:[#allocation7 + $0xc0] sm:$0xff]
        %v615 = vld [vmem:[#allocation7 + $0xc8] sm:$0xff]
        %v616 = vld [vmem:[#allocation7 + $0xd0] sm:$0xff]
        %v617 = vld [vmem:[#allocation7 + $0xd8] sm:$0xff]
        %v618 = vld [vmem:[#allocation7 + $0xe0] sm:$0xff]
        %v619 = vld [vmem:[#allocation7 + $0xe8] sm:$0xff]
        %v620 = vld [vmem:[#allocation7 + $0xf0] sm:$0xff]
        %v621 = vld [vmem:[#allocation7 + $0xf8] sm:$0xff]
        %v622 = vld [vmem:[#allocation7 + $0x100] sm:$0xff]
        %v623 = vld [vmem:[#allocation7 + $0x108] sm:$0xff]
        %v624 = vld [vmem:[#allocation7 + $0x110] sm:$0xff]
        %v625 = vld [vmem:[#allocation7 + $0x118] sm:$0xff]
        %v626 = vld [vmem:[#allocation7 + $0x120] sm:$0xff]
        %v627 = vld [vmem:[#allocation7 + $0x128] sm:$0xff]
        %v628 = vld [vmem:[#allocation7 + $0x130] sm:$0xff]
        %v629 = vld [vmem:[#allocation7 + $0x138] sm:$0xff]
        %v630 = vld [vmem:[#allocation7 + $0x140] sm:$0xff]
        %v631 = vld [vmem:[#allocation7 + $0x148] sm:$0xff]
        %v632 = vld [vmem:[#allocation7 + $0x150] sm:$0xff]
        %v633 = vld [vmem:[#allocation7 + $0x158] sm:$0xff]
        %v634 = vld [vmem:[#allocation7 + $0x160] sm:$0xff]
        %v635 = vld [vmem:[#allocation7 + $0x168] sm:$0xff]
        %v636 = vld [vmem:[#allocation7 + $0x170] sm:$0xff]
        %v637 = vld [vmem:[#allocation7 + $0x178] sm:$0xff]
        %638 = vmatpush.msra.mxu0 %v635
        %639 = vmatpush.msra.mxu0 %v632
        %640 = vmatpush.msra.mxu0 %v629
        %641 = vmatpush.msra.mxu0 %v626
        %642 = vmatpush.msra.mxu0 %v623
        %643 = vmatpush.msra.mxu0 %v620
        %644 = vmatpush.msra.mxu0 %v617
        %645 = vmatpush.msra.mxu0 %v614
        %646 = vmatpush.msra.mxu0 %v611
        %647 = vmatpush.msra.mxu0 %v608
        %648 = vmatpush.msra.mxu0 %v605
        %649 = vmatpush.msra.mxu0 %v602
        %650 = vmatpush.msra.mxu0 %v599
        %651 = vmatpush.msra.mxu0 %v596
        %652 = vmatpush.msra.mxu0 %v593
        %653 = vmatpush.msra.mxu0 %v590
        %654 = vmatmul.f32.gmra.mxu0 %v588
        %v655 = vpop.f32.mrf.mxu0
        %v656 = vadd.f32 0.0, %v655
        %657 = vmatmul.f32.gmra.mxu0 %v589
        %v658 = vpop.f32.mrf.mxu0
        %v659 = vadd.f32 0.0, %v658
        %660 = vdwg.mxu0
        %661 = vmatpush.msra.mxu0 %v636
        %662 = vmatpush.msra.mxu0 %v633
        %663 = vmatpush.msra.mxu0 %v630
        %664 = vmatpush.msra.mxu0 %v627
        %665 = vmatpush.msra.mxu0 %v624
        %666 = vmatpush.msra.mxu0 %v621
        %667 = vmatpush.msra.mxu0 %v618
        %668 = vmatpush.msra.mxu0 %v615
        %669 = vmatpush.msra.mxu0 %v612
        %670 = vmatpush.msra.mxu0 %v609
        %671 = vmatpush.msra.mxu0 %v606
        %672 = vmatpush.msra.mxu0 %v603
        %673 = vmatpush.msra.mxu0 %v600
        %674 = vmatpush.msra.mxu0 %v597
        %675 = vmatpush.msra.mxu0 %v594
        %676 = vmatpush.msra.mxu0 %v591
        %677 = vmatmul.f32.gmra.mxu0 %v588
        %v678 = vpop.f32.mrf.mxu0
        %v679 = vadd.f32 0.0, %v678
        %680 = vmatmul.f32.gmra.mxu0 %v589
        %v681 = vpop.f32.mrf.mxu0
        %v682 = vadd.f32 0.0, %v681
        %683 = vdwg.mxu0
        %684 = vmatpush.msra.mxu0 %v637
        %685 = vmatpush.msra.mxu0 %v634
        %686 = vmatpush.msra.mxu0 %v631
        %687 = vmatpush.msra.mxu0 %v628
        %688 = vmatpush.msra.mxu0 %v625
        %689 = vmatpush.msra.mxu0 %v622
        %690 = vmatpush.msra.mxu0 %v619
        %691 = vmatpush.msra.mxu0 %v616
        %692 = vmatpush.msra.mxu0 %v613
        %693 = vmatpush.msra.mxu0 %v610
        %694 = vmatpush.msra.mxu0 %v607
        %695 = vmatpush.msra.mxu0 %v604
        %696 = vmatpush.msra.mxu0 %v601
        %697 = vmatpush.msra.mxu0 %v598
        %698 = vmatpush.msra.mxu0 %v595
        %699 = vmatpush.msra.mxu0 %v592
        %700 = vmatmul.f32.gmra.mxu0 %v588
        %v701 = vpop.f32.mrf.mxu0
        %v702 = vadd.f32 0.0, %v701
        %703 = vmatmul.f32.gmra.mxu0 %v589
        %v704 = vpop.f32.mrf.mxu0
        %v705 = vadd.f32 0.0, %v704
        %706 = vdwg.mxu0
        %v707 = vld [vmem:[#allocation8] sm:$0xff]
        %v708 = vld [vmem:[#allocation8 + $0x8] sm:$0xff]
        %v709 = vld [vmem:[#allocation8 + $0x10] sm:$0xff]
        %v710 = vld [vmem:[#allocation8 + $0x18] sm:$0xff]
        %v711 = vld [vmem:[#allocation8 + $0x20] sm:$0xff]
        %v712 = vld [vmem:[#allocation8 + $0x28] sm:$0xff]
        %v713 = vld [vmem:[#allocation8 + $0x30] sm:$0xff]
        %v714 = vld [vmem:[#allocation8 + $0x38] sm:$0xff]
        %v715 = vld [vmem:[#allocation8 + $0x40] sm:$0xff]
        %v716 = vld [vmem:[#allocation8 + $0x48] sm:$0xff]
        %v717 = vld [vmem:[#allocation8 + $0x50] sm:$0xff]
        %v718 = vld [vmem:[#allocation8 + $0x58] sm:$0xff]
        %v719 = vld [vmem:[#allocation8 + $0x60] sm:$0xff]
        %v720 = vld [vmem:[#allocation8 + $0x68] sm:$0xff]
        %v721 = vld [vmem:[#allocation8 + $0x70] sm:$0xff]
        %v722 = vld [vmem:[#allocation8 + $0x78] sm:$0xff]
        %vm723 = vcmask 261120
        %v725 = vsel %vm723, %v656, 0
        %v728 = vsel %vm723, %v659, 0
        %v731 = vsel %vm723, %v679, 0
        %v734 = vsel %vm723, %v682, 0
        %736 = vmatpush.xpose.msra.mxu0 0.0
        %737 = vmatpush.xpose.msra.mxu0 0.0
        %738 = vmatpush.xpose.msra.mxu0 0.0
        %739 = vmatpush.xpose.msra.mxu0 0.0
        %740 = vmatpush.xpose.msra.mxu0 0.0
        %741 = vmatpush.xpose.msra.mxu0 0.0
        %742 = vmatpush.xpose.msra.mxu0 0.0
        %743 = vmatpush.xpose.msra.mxu0 0.0
        %744 = vmatpush.xpose.msra.mxu0 0.0
        %745 = vmatpush.xpose.msra.mxu0 0.0
        %746 = vmatpush.xpose.msra.mxu0 0.0
        %747 = vmatpush.xpose.msra.mxu0 0.0
        %748 = vmatpush.xpose.msra.mxu0 0.0
        %749 = vmatpush.xpose.msra.mxu0 0.0
        %750 = vmatpush.xpose.msra.mxu0 %v734
        %751 = vmatpush.xpose.msra.mxu0 %v731
        %752 = vmatmul.f32.gmra.mxu0 %v725
        %v753 = vpop.f32.mrf.mxu0
        %v754 = vadd.f32 0.0, %v753
        %755 = vmatmul.f32.gmra.mxu0 %v728
        %v756 = vpop.f32.mrf.mxu0
        %v757 = vadd.f32 0.0, %v756
        %758 = vdwg.mxu0
        %v759 = vmul.f32 %v754, 0.17677669
        %v760 = vmul.f32 %v757, 0.17677669
        %vm761 = vcmask 130048
        %v762 = vsel %vm761, %v759, -inf
        %763 = vmax.xlane.f32.xlu0 %v762
        %v764 = vpop.xlane.xlu0 %763
        %v765 = vsel %vm761, %v760, -inf
        %766 = vmax.xlane.f32.xlu0 %v765
        %v767 = vpop.xlane.xlu0 %766
        %v768 = vsub.f32 %v759, %v764
        %v769 = vsub.f32 %v760, %v767
        %v770 = vmul.f32 %v768, 1.442695
        %v771 = vpow.pop %v770
        %v772 = vmul.f32 %v769, 1.442695
        %v773 = vpow.pop %v772
        %v774 = vsel %vm761, %v771, 0.0
        %775 = vadd.xlane.f32.xlu0 %v774
        %v776 = vpop.xlane.xlu0 %775
        %v777 = vsel %vm761, %v773, 0.0
        %778 = vadd.xlane.f32.xlu0 %v777
        %v779 = vpop.xlane.xlu0 %778
        %v780 = vrcp.pop %v776
        %v781 = vmul.f32 %v776, %v780
        %v782 = vsub.f32 1.0, %v781
        %v783 = vmul.f32 %v780, %v782
        %v784 = vadd.f32 %v780, %v783
        %vm785 = vweird.f32 %v776
        %vm786 = vweird.f32 %v780
        %vm787 = vmor %vm785, %vm786
        %v788 = vsel %vm787, %v780, %v784
        %v789 = vand.u32 2147483647, %v776
        %vm790 = vcmp.eq.f32.partialorder %v789, 8.507059e+37
        %v791 = vand.u32 %v776, 2147483648
        %v792 = vor.u32 1.1754944e-38, %v791
        %v793 = vsel %vm790, %v792, %v788
        %v794 = vmul.f32 %v771, %v793
        %v795 = vrcp.pop %v779
        %v796 = vmul.f32 %v779, %v795
        %v797 = vsub.f32 1.0, %v796
        %v798 = vmul.f32 %v795, %v797
        %v799 = vadd.f32 %v795, %v798
        %vm800 = vweird.f32 %v779
        %vm801 = vweird.f32 %v795
        %vm802 = vmor %vm800, %vm801
        %v803 = vsel %vm802, %v795, %v799
        %v804 = vand.u32 2147483647, %v779
        %vm805 = vcmp.eq.f32.partialorder %v804, 8.507059e+37
        %v806 = vand.u32 %v779, 2147483648
        %v807 = vor.u32 1.1754944e-38, %v806
        %v808 = vsel %vm805, %v807, %v803
        %v809 = vmul.f32 %v773, %v808
        %v811 = vsel %vm761, %v794, 0
        %v814 = vsel %vm761, %v809, 0
        %816 = vmatpush.msra.mxu0 0.0
        %817 = vmatpush.msra.mxu0 0.0
        %818 = vmatpush.msra.mxu0 0.0
        %819 = vmatpush.msra.mxu0 0.0
        %820 = vmatpush.msra.mxu0 0.0
        %821 = vmatpush.msra.mxu0 0.0
        %822 = vmatpush.msra.mxu0 0.0
        %823 = vmatpush.msra.mxu0 0.0
        %824 = vmatpush.msra.mxu0 0.0
        %825 = vmatpush.msra.mxu0 0.0
        %826 = vmatpush.msra.mxu0 0.0
        %827 = vmatpush.msra.mxu0 0.0
        %828 = vmatpush.msra.mxu0 0.0
        %829 = vmatpush.msra.mxu0 0.0
        %830 = vmatpush.msra.mxu0 %v705
        %831 = vmatpush.msra.mxu0 %v702
        %832 = vmatmul.f32.gmra.mxu0 %v811
        %v833 = vpop.f32.mrf.mxu0
        %v834 = vadd.f32 0.0, %v833
        %835 = vmatmul.f32.gmra.mxu0 %v814
        %v836 = vpop.f32.mrf.mxu0
        %v837 = vadd.f32 0.0, %v836
        %838 = vdwg.mxu0
        %839 = vrot.lane.b32.xlu0 %v656, 96
        %v840 = vpop.permute.xlu0 %839
        %841 = vrot.lane.b32.xlu0 %v659, 96
        %v842 = vpop.permute.xlu0 %841
        %843 = vrot.lane.b32.xlu0 %v679, 96
        %v844 = vpop.permute.xlu0 %843
        %845 = vrot.lane.b32.xlu0 %v682, 96
        %v846 = vpop.permute.xlu0 %845
        %v847 = vsel %vm723, %v840, 0
        %v849 = vsel %vm723, %v842, 0
        %v851 = vsel %vm723, %v844, 0
        %v853 = vsel %vm723, %v846, 0
        %855 = vmatpush.xpose.msra.mxu0 0.0
        %856 = vmatpush.xpose.msra.mxu0 0.0
        %857 = vmatpush.xpose.msra.mxu0 0.0
        %858 = vmatpush.xpose.msra.mxu0 0.0
        %859 = vmatpush.xpose.msra.mxu0 0.0
        %860 = vmatpush.xpose.msra.mxu0 0.0
        %861 = vmatpush.xpose.msra.mxu0 0.0
        %862 = vmatpush.xpose.msra.mxu0 0.0
        %863 = vmatpush.xpose.msra.mxu0 0.0
        %864 = vmatpush.xpose.msra.mxu0 0.0
        %865 = vmatpush.xpose.msra.mxu0 0.0
        %866 = vmatpush.xpose.msra.mxu0 0.0
        %867 = vmatpush.xpose.msra.mxu0 0.0
        %868 = vmatpush.xpose.msra.mxu0 0.0
        %869 = vmatpush.xpose.msra.mxu0 %v853
        %870 = vmatpush.xpose.msra.mxu0 %v851
        %871 = vmatmul.f32.gmra.mxu0 %v847
        %v872 = vpop.f32.mrf.mxu0
        %v873 = vadd.f32 0.0, %v872
        %874 = vmatmul.f32.gmra.mxu0 %v849
        %v875 = vpop.f32.mrf.mxu0
        %v876 = vadd.f32 0.0, %v875
        %877 = vdwg.mxu0
        %v878 = vmul.f32 %v873, 0.17677669
        %v879 = vmul.f32 %v876, 0.17677669
        %v880 = vsel %vm761, %v878, -inf
        %881 = vmax.xlane.f32.xlu0 %v880
        %v882 = vpop.xlane.xlu0 %881
        %v883 = vsel %vm761, %v879, -inf
        %884 = vmax.xlane.f32.xlu0 %v883
        %v885 = vpop.xlane.xlu0 %884
        %v886 = vsub.f32 %v878, %v882
        %v887 = vsub.f32 %v879, %v885
        %v888 = vmul.f32 %v886, 1.442695
        %v889 = vpow.pop %v888
        %v890 = vmul.f32 %v887, 1.442695
        %v891 = vpow.pop %v890
        %v892 = vsel %vm761, %v889, 0.0
        %893 = vadd.xlane.f32.xlu0 %v892
        %v894 = vpop.xlane.xlu0 %893
        %v895 = vsel %vm761, %v891, 0.0
        %896 = vadd.xlane.f32.xlu0 %v895
        %v897 = vpop.xlane.xlu0 %896
        %v898 = vrcp.pop %v894
        %v899 = vmul.f32 %v894, %v898
        %v900 = vsub.f32 1.0, %v899
        %v901 = vmul.f32 %v898, %v900
        %v902 = vadd.f32 %v898, %v901
        %vm903 = vweird.f32 %v894
        %vm904 = vweird.f32 %v898
        %vm905 = vmor %vm903, %vm904
        %v906 = vsel %vm905, %v898, %v902
        %v907 = vand.u32 2147483647, %v894
        %vm908 = vcmp.eq.f32.partialorder %v907, 8.507059e+37
        %v909 = vand.u32 %v894, 2147483648
        %v910 = vor.u32 1.1754944e-38, %v909
        %v911 = vsel %vm908, %v910, %v906
        %v912 = vmul.f32 %v889, %v911
        %v913 = vrcp.pop %v897
        %v914 = vmul.f32 %v897, %v913
        %v915 = vsub.f32 1.0, %v914
        %v916 = vmul.f32 %v913, %v915
        %v917 = vadd.f32 %v913, %v916
        %vm918 = vweird.f32 %v897
        %vm919 = vweird.f32 %v913
        %vm920 = vmor %vm918, %vm919
        %v921 = vsel %vm920, %v913, %v917
        %v922 = vand.u32 2147483647, %v897
        %vm923 = vcmp.eq.f32.partialorder %v922, 8.507059e+37
        %v924 = vand.u32 %v897, 2147483648
        %v925 = vor.u32 1.1754944e-38, %v924
        %v926 = vsel %vm923, %v925, %v921
        %v927 = vmul.f32 %v891, %v926
        %930 = vrot.lane.b32.xlu0 %v702, 96
        %v931 = vpop.permute.xlu0 %930
        %932 = vrot.lane.b32.xlu0 %v705, 96
        %v933 = vpop.permute.xlu0 %932
        %v937 = vsel %vm761, %v912, 0
        %v940 = vsel %vm761, %v927, 0
        %942 = vmatpush.msra.mxu0 0.0
        %943 = vmatpush.msra.mxu0 0.0
        %944 = vmatpush.msra.mxu0 0.0
        %945 = vmatpush.msra.mxu0 0.0
        %946 = vmatpush.msra.mxu0 0.0
        %947 = vmatpush.msra.mxu0 0.0
        %948 = vmatpush.msra.mxu0 0.0
        %949 = vmatpush.msra.mxu0 0.0
        %950 = vmatpush.msra.mxu0 0.0
        %951 = vmatpush.msra.mxu0 0.0
        %952 = vmatpush.msra.mxu0 0.0
        %953 = vmatpush.msra.mxu0 0.0
        %954 = vmatpush.msra.mxu0 0.0
        %955 = vmatpush.msra.mxu0 0.0
        %956 = vmatpush.msra.mxu0 %v933
        %957 = vmatpush.msra.mxu0 %v931
        %958 = vmatmul.f32.gmra.mxu0 %v937
        %v959 = vpop.f32.mrf.mxu0
        %v960 = vadd.f32 0.0, %v959
        %961 = vmatmul.f32.gmra.mxu0 %v940
        %v962 = vpop.f32.mrf.mxu0
        %v963 = vadd.f32 0.0, %v962
        %964 = vdwg.mxu0
        %v966 = vsel %vm723, %v960, 0
        %v969 = vsel %vm723, %v963, 0
        %971 = vmatpush.msra.mxu0 0.0
        %972 = vmatpush.msra.mxu0 0.0
        %973 = vmatpush.msra.mxu0 0.0
        %974 = vmatpush.msra.mxu0 0.0
        %975 = vmatpush.msra.mxu0 0.0
        %976 = vmatpush.msra.mxu0 0.0
        %977 = vmatpush.msra.mxu0 0.0
        %978 = vmatpush.msra.mxu0 0.0
        %979 = vmatpush.msra.mxu0 0.0
        %980 = vmatpush.msra.mxu0 0.0
        %981 = vmatpush.msra.mxu0 0.0
        %982 = vmatpush.msra.mxu0 0.0
        %983 = vmatpush.msra.mxu0 %v714
        %984 = vmatpush.msra.mxu0 %v713
        %985 = vmatpush.msra.mxu0 %v712
        %986 = vmatpush.msra.mxu0 %v711
        %987 = vmatmul.f32.gmra.mxu0 %v966
        %v988 = vpop.f32.mrf.mxu0
        %v989 = vadd.f32 0.0, %v988
        %990 = vmatmul.f32.gmra.mxu0 %v969
        %v991 = vpop.f32.mrf.mxu0
        %v992 = vadd.f32 0.0, %v991
        %993 = vdwg.mxu0
        %v995 = vsel %vm723, %v834, 0
        %v998 = vsel %vm723, %v837, 0
        %1000 = vmatpush.msra.mxu0 0.0
        %1001 = vmatpush.msra.mxu0 0.0
        %1002 = vmatpush.msra.mxu0 0.0
        %1003 = vmatpush.msra.mxu0 0.0
        %1004 = vmatpush.msra.mxu0 0.0
        %1005 = vmatpush.msra.mxu0 0.0
        %1006 = vmatpush.msra.mxu0 0.0
        %1007 = vmatpush.msra.mxu0 0.0
        %1008 = vmatpush.msra.mxu0 0.0
        %1009 = vmatpush.msra.mxu0 0.0
        %1010 = vmatpush.msra.mxu0 0.0
        %1011 = vmatpush.msra.mxu0 0.0
        %1012 = vmatpush.msra.mxu0 %v710
        %1013 = vmatpush.msra.mxu0 %v709
        %1014 = vmatpush.msra.mxu0 %v708
        %1015 = vmatpush.msra.mxu0 %v707
        %1016 = vmatmul.f32.gmra.mxu0 %v995
        %v1017 = vpop.f32.mrf.mxu0
        %v1018 = vadd.f32 %v989, %v1017
        %1019 = vmatmul.f32.gmra.mxu0 %v998
        %v1020 = vpop.f32.mrf.mxu0
        %v1021 = vadd.f32 %v992, %v1020
        %1022 = vdwg.mxu0
        %1023 = vrot.lane.b32.xlu0 %v656, 64
        %v1024 = vpop.permute.xlu0 %1023
        %1025 = vrot.lane.b32.xlu0 %v659, 64
        %v1026 = vpop.permute.xlu0 %1025
        %1027 = vrot.lane.b32.xlu0 %v679, 64
        %v1028 = vpop.permute.xlu0 %1027
        %1029 = vrot.lane.b32.xlu0 %v682, 64
        %v1030 = vpop.permute.xlu0 %1029
        %v1031 = vsel %vm723, %v1024, 0
        %v1033 = vsel %vm723, %v1026, 0
        %v1035 = vsel %vm723, %v1028, 0
        %v1037 = vsel %vm723, %v1030, 0
        %1039 = vmatpush.xpose.msra.mxu0 0.0
        %1040 = vmatpush.xpose.msra.mxu0 0.0
        %1041 = vmatpush.xpose.msra.mxu0 0.0
        %1042 = vmatpush.xpose.msra.mxu0 0.0
        %1043 = vmatpush.xpose.msra.mxu0 0.0
        %1044 = vmatpush.xpose.msra.mxu0 0.0
        %1045 = vmatpush.xpose.msra.mxu0 0.0
        %1046 = vmatpush.xpose.msra.mxu0 0.0
        %1047 = vmatpush.xpose.msra.mxu0 0.0
        %1048 = vmatpush.xpose.msra.mxu0 0.0
        %1049 = vmatpush.xpose.msra.mxu0 0.0
        %1050 = vmatpush.xpose.msra.mxu0 0.0
        %1051 = vmatpush.xpose.msra.mxu0 0.0
        %1052 = vmatpush.xpose.msra.mxu0 0.0
        %1053 = vmatpush.xpose.msra.mxu0 %v1037
        %1054 = vmatpush.xpose.msra.mxu0 %v1035
        %1055 = vmatmul.f32.gmra.mxu0 %v1031
        %v1056 = vpop.f32.mrf.mxu0
        %v1057 = vadd.f32 0.0, %v1056
        %1058 = vmatmul.f32.gmra.mxu0 %v1033
        %v1059 = vpop.f32.mrf.mxu0
        %v1060 = vadd.f32 0.0, %v1059
        %1061 = vdwg.mxu0
        %v1062 = vmul.f32 %v1057, 0.17677669
        %v1063 = vmul.f32 %v1060, 0.17677669
        %v1064 = vsel %vm761, %v1062, -inf
        %1065 = vmax.xlane.f32.xlu0 %v1064
        %v1066 = vpop.xlane.xlu0 %1065
        %v1067 = vsel %vm761, %v1063, -inf
        %1068 = vmax.xlane.f32.xlu0 %v1067
        %v1069 = vpop.xlane.xlu0 %1068
        %v1070 = vsub.f32 %v1062, %v1066
        %v1071 = vsub.f32 %v1063, %v1069
        %v1072 = vmul.f32 %v1070, 1.442695
        %v1073 = vpow.pop %v1072
        %v1074 = vmul.f32 %v1071, 1.442695
        %v1075 = vpow.pop %v1074
        %v1076 = vsel %vm761, %v1073, 0.0
        %1077 = vadd.xlane.f32.xlu0 %v1076
        %v1078 = vpop.xlane.xlu0 %1077
        %v1079 = vsel %vm761, %v1075, 0.0
        %1080 = vadd.xlane.f32.xlu0 %v1079
        %v1081 = vpop.xlane.xlu0 %1080
        %v1082 = vrcp.pop %v1078
        %v1083 = vmul.f32 %v1078, %v1082
        %v1084 = vsub.f32 1.0, %v1083
        %v1085 = vmul.f32 %v1082, %v1084
        %v1086 = vadd.f32 %v1082, %v1085
        %vm1087 = vweird.f32 %v1078
        %vm1088 = vweird.f32 %v1082
        %vm1089 = vmor %vm1087, %vm1088
        %v1090 = vsel %vm1089, %v1082, %v1086
        %v1091 = vand.u32 2147483647, %v1078
        %vm1092 = vcmp.eq.f32.partialorder %v1091, 8.507059e+37
        %v1093 = vand.u32 %v1078, 2147483648
        %v1094 = vor.u32 1.1754944e-38, %v1093
        %v1095 = vsel %vm1092, %v1094, %v1090
        %v1096 = vmul.f32 %v1073, %v1095
        %v1097 = vrcp.pop %v1081
        %v1098 = vmul.f32 %v1081, %v1097
        %v1099 = vsub.f32 1.0, %v1098
        %v1100 = vmul.f32 %v1097, %v1099
        %v1101 = vadd.f32 %v1097, %v1100
        %vm1102 = vweird.f32 %v1081
        %vm1103 = vweird.f32 %v1097
        %vm1104 = vmor %vm1102, %vm1103
        %v1105 = vsel %vm1104, %v1097, %v1101
        %v1106 = vand.u32 2147483647, %v1081
        %vm1107 = vcmp.eq.f32.partialorder %v1106, 8.507059e+37
        %v1108 = vand.u32 %v1081, 2147483648
        %v1109 = vor.u32 1.1754944e-38, %v1108
        %v1110 = vsel %vm1107, %v1109, %v1105
        %v1111 = vmul.f32 %v1075, %v1110
        %1112 = vrot.lane.b32.xlu0 %v702, 64
        %v1113 = vpop.permute.xlu0 %1112
        %1114 = vrot.lane.b32.xlu0 %v705, 64
        %v1115 = vpop.permute.xlu0 %1114
        %v1119 = vsel %vm761, %v1096, 0
        %v1122 = vsel %vm761, %v1111, 0
        %1124 = vmatpush.msra.mxu0 0.0
        %1125 = vmatpush.msra.mxu0 0.0
        %1126 = vmatpush.msra.mxu0 0.0
        %1127 = vmatpush.msra.mxu0 0.0
        %1128 = vmatpush.msra.mxu0 0.0
        %1129 = vmatpush.msra.mxu0 0.0
        %1130 = vmatpush.msra.mxu0 0.0
        %1131 = vmatpush.msra.mxu0 0.0
        %1132 = vmatpush.msra.mxu0 0.0
        %1133 = vmatpush.msra.mxu0 0.0
        %1134 = vmatpush.msra.mxu0 0.0
        %1135 = vmatpush.msra.mxu0 0.0
        %1136 = vmatpush.msra.mxu0 0.0
        %1137 = vmatpush.msra.mxu0 0.0
        %1138 = vmatpush.msra.mxu0 %v1115
        %1139 = vmatpush.msra.mxu0 %v1113
        %1140 = vmatmul.f32.gmra.mxu0 %v1119
        %v1141 = vpop.f32.mrf.mxu0
        %v1142 = vadd.f32 0.0, %v1141
        %1143 = vmatmul.f32.gmra.mxu0 %v1122
        %v1144 = vpop.f32.mrf.mxu0
        %v1145 = vadd.f32 0.0, %v1144
        %1146 = vdwg.mxu0
        %v1148 = vsel %vm723, %v1142, 0
        %v1151 = vsel %vm723, %v1145, 0
        %1153 = vmatpush.msra.mxu0 0.0
        %1154 = vmatpush.msra.mxu0 0.0
        %1155 = vmatpush.msra.mxu0 0.0
        %1156 = vmatpush.msra.mxu0 0.0
        %1157 = vmatpush.msra.mxu0 0.0
        %1158 = vmatpush.msra.mxu0 0.0
        %1159 = vmatpush.msra.mxu0 0.0
        %1160 = vmatpush.msra.mxu0 0.0
        %1161 = vmatpush.msra.mxu0 0.0
        %1162 = vmatpush.msra.mxu0 0.0
        %1163 = vmatpush.msra.mxu0 0.0
        %1164 = vmatpush.msra.mxu0 0.0
        %1165 = vmatpush.msra.mxu0 %v718
        %1166 = vmatpush.msra.mxu0 %v717
        %1167 = vmatpush.msra.mxu0 %v716
        %1168 = vmatpush.msra.mxu0 %v715
        %1169 = vmatmul.f32.gmra.mxu0 %v1148
        %v1170 = vpop.f32.mrf.mxu0
        %v1171 = vadd.f32 0.0, %v1170
        %1172 = vmatmul.f32.gmra.mxu0 %v1151
        %v1173 = vpop.f32.mrf.mxu0
        %v1174 = vadd.f32 0.0, %v1173
        %1175 = vdwg.mxu0
        %v1176 = vadd.f32 %v1018, %v1171
        %v1177 = vadd.f32 %v1021, %v1174
        %1178 = vrot.lane.b32.xlu0 %v656, 32
        %v1179 = vpop.permute.xlu0 %1178
        %1180 = vrot.lane.b32.xlu0 %v659, 32
        %v1181 = vpop.permute.xlu0 %1180
        %1182 = vrot.lane.b32.xlu0 %v679, 32
        %v1183 = vpop.permute.xlu0 %1182
        %1184 = vrot.lane.b32.xlu0 %v682, 32
        %v1185 = vpop.permute.xlu0 %1184
        %v1186 = vsel %vm723, %v1179, 0
        %v1188 = vsel %vm723, %v1181, 0
        %v1190 = vsel %vm723, %v1183, 0
        %v1192 = vsel %vm723, %v1185, 0
        %1194 = vmatpush.xpose.msra.mxu0 0.0
        %1195 = vmatpush.xpose.msra.mxu0 0.0
        %1196 = vmatpush.xpose.msra.mxu0 0.0
        %1197 = vmatpush.xpose.msra.mxu0 0.0
        %1198 = vmatpush.xpose.msra.mxu0 0.0
        %1199 = vmatpush.xpose.msra.mxu0 0.0
        %1200 = vmatpush.xpose.msra.mxu0 0.0
        %1201 = vmatpush.xpose.msra.mxu0 0.0
        %1202 = vmatpush.xpose.msra.mxu0 0.0
        %1203 = vmatpush.xpose.msra.mxu0 0.0
        %1204 = vmatpush.xpose.msra.mxu0 0.0
        %1205 = vmatpush.xpose.msra.mxu0 0.0
        %1206 = vmatpush.xpose.msra.mxu0 0.0
        %1207 = vmatpush.xpose.msra.mxu0 0.0
        %1208 = vmatpush.xpose.msra.mxu0 %v1192
        %1209 = vmatpush.xpose.msra.mxu0 %v1190
        %1210 = vmatmul.f32.gmra.mxu0 %v1186
        %v1211 = vpop.f32.mrf.mxu0
        %v1212 = vadd.f32 0.0, %v1211
        %1213 = vmatmul.f32.gmra.mxu0 %v1188
        %v1214 = vpop.f32.mrf.mxu0
        %v1215 = vadd.f32 0.0, %v1214
        %1216 = vdwg.mxu0
        %v1217 = vmul.f32 %v1212, 0.17677669
        %v1218 = vmul.f32 %v1215, 0.17677669
        %v1219 = vsel %vm761, %v1217, -inf
        %1220 = vmax.xlane.f32.xlu0 %v1219
        %v1221 = vpop.xlane.xlu0 %1220
        %v1222 = vsel %vm761, %v1218, -inf
        %1223 = vmax.xlane.f32.xlu0 %v1222
        %v1224 = vpop.xlane.xlu0 %1223
        %v1225 = vsub.f32 %v1217, %v1221
        %v1226 = vsub.f32 %v1218, %v1224
        %v1227 = vmul.f32 %v1225, 1.442695
        %v1228 = vpow.pop %v1227
        %v1229 = vmul.f32 %v1226, 1.442695
        %v1230 = vpow.pop %v1229
        %v1231 = vsel %vm761, %v1228, 0.0
        %1232 = vadd.xlane.f32.xlu0 %v1231
        %v1233 = vpop.xlane.xlu0 %1232
        %v1234 = vsel %vm761, %v1230, 0.0
        %1235 = vadd.xlane.f32.xlu0 %v1234
        %v1236 = vpop.xlane.xlu0 %1235
        %v1237 = vrcp.pop %v1233
        %v1238 = vmul.f32 %v1233, %v1237
        %v1239 = vsub.f32 1.0, %v1238
        %v1240 = vmul.f32 %v1237, %v1239
        %v1241 = vadd.f32 %v1237, %v1240
        %vm1242 = vweird.f32 %v1233
        %vm1243 = vweird.f32 %v1237
        %vm1244 = vmor %vm1242, %vm1243
        %v1245 = vsel %vm1244, %v1237, %v1241
        %v1246 = vand.u32 2147483647, %v1233
        %vm1247 = vcmp.eq.f32.partialorder %v1246, 8.507059e+37
        %v1248 = vand.u32 %v1233, 2147483648
        %v1249 = vor.u32 1.1754944e-38, %v1248
        %v1250 = vsel %vm1247, %v1249, %v1245
        %v1251 = vmul.f32 %v1228, %v1250
        %v1252 = vrcp.pop %v1236
        %v1253 = vmul.f32 %v1236, %v1252
        %v1254 = vsub.f32 1.0, %v1253
        %v1255 = vmul.f32 %v1252, %v1254
        %v1256 = vadd.f32 %v1252, %v1255
        %vm1257 = vweird.f32 %v1236
        %vm1258 = vweird.f32 %v1252
        %vm1259 = vmor %vm1257, %vm1258
        %v1260 = vsel %vm1259, %v1252, %v1256
        %v1261 = vand.u32 2147483647, %v1236
        %vm1262 = vcmp.eq.f32.partialorder %v1261, 8.507059e+37
        %v1263 = vand.u32 %v1236, 2147483648
        %v1264 = vor.u32 1.1754944e-38, %v1263
        %v1265 = vsel %vm1262, %v1264, %v1260
        %v1266 = vmul.f32 %v1230, %v1265
        %1267 = vrot.lane.b32.xlu0 %v702, 32
        %v1268 = vpop.permute.xlu0 %1267
        %1269 = vrot.lane.b32.xlu0 %v705, 32
        %v1270 = vpop.permute.xlu0 %1269
        %v1274 = vsel %vm761, %v1251, 0
        %v1277 = vsel %vm761, %v1266, 0
        %1279 = vmatpush.msra.mxu0 0.0
        %1280 = vmatpush.msra.mxu0 0.0
        %1281 = vmatpush.msra.mxu0 0.0
        %1282 = vmatpush.msra.mxu0 0.0
        %1283 = vmatpush.msra.mxu0 0.0
        %1284 = vmatpush.msra.mxu0 0.0
        %1285 = vmatpush.msra.mxu0 0.0
        %1286 = vmatpush.msra.mxu0 0.0
        %1287 = vmatpush.msra.mxu0 0.0
        %1288 = vmatpush.msra.mxu0 0.0
        %1289 = vmatpush.msra.mxu0 0.0
        %1290 = vmatpush.msra.mxu0 0.0
        %1291 = vmatpush.msra.mxu0 0.0
        %1292 = vmatpush.msra.mxu0 0.0
        %1293 = vmatpush.msra.mxu0 %v1270
        %1294 = vmatpush.msra.mxu0 %v1268
        %1295 = vmatmul.f32.gmra.mxu0 %v1274
        %v1296 = vpop.f32.mrf.mxu0
        %v1297 = vadd.f32 0.0, %v1296
        %1298 = vmatmul.f32.gmra.mxu0 %v1277
        %v1299 = vpop.f32.mrf.mxu0
        %v1300 = vadd.f32 0.0, %v1299
        %1301 = vdwg.mxu0
        %v1303 = vsel %vm723, %v1297, 0
        %v1306 = vsel %vm723, %v1300, 0
        %1308 = vmatpush.msra.mxu0 0.0
        %1309 = vmatpush.msra.mxu0 0.0
        %1310 = vmatpush.msra.mxu0 0.0
        %1311 = vmatpush.msra.mxu0 0.0
        %1312 = vmatpush.msra.mxu0 0.0
        %1313 = vmatpush.msra.mxu0 0.0
        %1314 = vmatpush.msra.mxu0 0.0
        %1315 = vmatpush.msra.mxu0 0.0
        %1316 = vmatpush.msra.mxu0 0.0
        %1317 = vmatpush.msra.mxu0 0.0
        %1318 = vmatpush.msra.mxu0 0.0
        %1319 = vmatpush.msra.mxu0 0.0
        %1320 = vmatpush.msra.mxu0 %v722
        %1321 = vmatpush.msra.mxu0 %v721
        %1322 = vmatpush.msra.mxu0 %v720
        %1323 = vmatpush.msra.mxu0 %v719
        %1324 = vmatmul.f32.gmra.mxu0 %v1303
        %v1325 = vpop.f32.mrf.mxu0
        %v1326 = vadd.f32 0.0, %v1325
        %1327 = vmatmul.f32.gmra.mxu0 %v1306
        %v1328 = vpop.f32.mrf.mxu0
        %v1329 = vadd.f32 0.0, %v1328
        %1330 = vdwg.mxu0
        %v1331 = vadd.f32 %v1176, %v1326
        %v1332 = vadd.f32 %v1177, %v1329
        %v1333 = vadd.f32 %v529, %v1331
        %v1334 = vadd.f32 %v530, %v1332
        %v1335 = vld [vmem:[%s5] sm:$0x1]
        %v1337 = vperm.slane %v1335, 0
        %v1339 = vadd.f32 %v1333, %v1337
        %v1340 = vadd.f32 %v1334, %v1337
        %v1341 = vld [vmem:[%s6] sm:$0x1]
        %v1342 = vld [vmem:[#allocation10] sm:$0x1]
        %1343 = vadd.xlane.f32.xlu0 %v1339
        %v1344 = vpop.xlane.xlu0 %1343
        %1345 = vadd.xlane.f32.xlu0 %v1340
        %v1346 = vpop.xlane.xlu0 %1345
        %v1347 = vmul.f32 %v1344, %v543
        %v1348 = vmul.f32 %v1346, %v543
        %v1349 = vsub.f32 %v1339, %v1347
        %v1350 = vsub.f32 %v1340, %v1348
        %v1351 = vmul.f32 %v1349, %v1349
        %v1352 = vmul.f32 %v1350, %v1350
        %1353 = vadd.xlane.f32.xlu0 %v1351
        %v1354 = vpop.xlane.xlu0 %1353
        %1355 = vadd.xlane.f32.xlu0 %v1352
        %v1356 = vpop.xlane.xlu0 %1355
        %v1357 = vmul.f32 %v1354, %v543
        %v1358 = vmul.f32 %v1356, %v543
        %v1359 = vadd.f32 %v1357, 1e-05
        %v1360 = vadd.f32 %v1358, 1e-05
        %v1361 = vrsqrt.pop %v1359
        %v1362 = vmul.f32 %v1361, %v1359
        %v1363 = vmul.f32 %v1362, %v1361
        %v1364 = vmul.f32 0.5, %v1363
        %v1365 = vsub.f32 1.5, %v1364
        %v1366 = vmul.f32 %v1361, %v1365
        %vm1367 = vweird.f32 %v1359
        %vm1368 = vweird.f32 %v1361
        %vm1369 = vmor %vm1367, %vm1368
        %v1370 = vsel %vm1369, %v1361, %v1366
        %v1371 = vrsqrt.pop %v1360
        %v1372 = vmul.f32 %v1371, %v1360
        %v1373 = vmul.f32 %v1372, %v1371
        %v1374 = vmul.f32 0.5, %v1373
        %v1375 = vsub.f32 1.5, %v1374
        %v1376 = vmul.f32 %v1371, %v1375
        %vm1377 = vweird.f32 %v1360
        %vm1378 = vweird.f32 %v1371
        %vm1379 = vmor %vm1377, %vm1378
        %v1380 = vsel %vm1379, %v1371, %v1376
        %v1381 = vmul.f32 %v1349, %v1370
        %v1382 = vmul.f32 %v1350, %v1380
        %v1384 = vperm.slane %v1341, 0
        %v1386 = vmul.f32 %v1381, %v1384
        %v1387 = vmul.f32 %v1382, %v1384
        %v1389 = vperm.slane %v1342, 0
        %v1391 = vadd.f32 %v1386, %v1389
        %v1392 = vadd.f32 %v1387, %v1389
        %v1393 = vld [vmem:[#allocation11] sm:$0xff]
        %v1394 = vld [vmem:[#allocation11 + $0x8] sm:$0xff]
        %v1395 = vld [vmem:[#allocation11 + $0x10] sm:$0xff]
        %v1396 = vld [vmem:[#allocation11 + $0x18] sm:$0xff]
        %v1397 = vld [vmem:[#allocation11 + $0x20] sm:$0xff]
        %v1398 = vld [vmem:[#allocation11 + $0x28] sm:$0xff]
        %v1399 = vld [vmem:[#allocation11 + $0x30] sm:$0xff]
        %v1400 = vld [vmem:[#allocation11 + $0x38] sm:$0xff]
        %v1401 = vld [vmem:[#allocation11 + $0x40] sm:$0xff]
        %v1402 = vld [vmem:[#allocation11 + $0x48] sm:$0xff]
        %v1403 = vld [vmem:[#allocation11 + $0x50] sm:$0xff]
        %v1404 = vld [vmem:[#allocation11 + $0x58] sm:$0xff]
        %v1405 = vld [vmem:[#allocation11 + $0x60] sm:$0xff]
        %v1406 = vld [vmem:[#allocation11 + $0x68] sm:$0xff]
        %v1407 = vld [vmem:[#allocation11 + $0x70] sm:$0xff]
        %v1408 = vld [vmem:[#allocation11 + $0x78] sm:$0xff]
        %v1409 = vld [vmem:[#allocation11 + $0x80] sm:$0xff]
        %v1410 = vld [vmem:[#allocation11 + $0x88] sm:$0xff]
        %v1411 = vld [vmem:[#allocation11 + $0x90] sm:$0xff]
        %v1412 = vld [vmem:[#allocation11 + $0x98] sm:$0xff]
        %v1413 = vld [vmem:[#allocation11 + $0xa0] sm:$0xff]
        %v1414 = vld [vmem:[#allocation11 + $0xa8] sm:$0xff]
        %v1415 = vld [vmem:[#allocation11 + $0xb0] sm:$0xff]
        %v1416 = vld [vmem:[#allocation11 + $0xb8] sm:$0xff]
        %v1417 = vld [vmem:[#allocation11 + $0xc0] sm:$0xff]
        %v1418 = vld [vmem:[#allocation11 + $0xc8] sm:$0xff]
        %v1419 = vld [vmem:[#allocation11 + $0xd0] sm:$0xff]
        %v1420 = vld [vmem:[#allocation11 + $0xd8] sm:$0xff]
        %v1421 = vld [vmem:[#allocation11 + $0xe0] sm:$0xff]
        %v1422 = vld [vmem:[#allocation11 + $0xe8] sm:$0xff]
        %v1423 = vld [vmem:[#allocation11 + $0xf0] sm:$0xff]
        %v1424 = vld [vmem:[#allocation11 + $0xf8] sm:$0xff]
        %v1425 = vld [vmem:[#allocation11 + $0x100] sm:$0xff]
        %v1426 = vld [vmem:[#allocation11 + $0x108] sm:$0xff]
        %v1427 = vld [vmem:[#allocation11 + $0x110] sm:$0xff]
        %v1428 = vld [vmem:[#allocation11 + $0x118] sm:$0xff]
        %v1429 = vld [vmem:[#allocation11 + $0x120] sm:$0xff]
        %v1430 = vld [vmem:[#allocation11 + $0x128] sm:$0xff]
        %v1431 = vld [vmem:[#allocation11 + $0x130] sm:$0xff]
        %v1432 = vld [vmem:[#allocation11 + $0x138] sm:$0xff]
        %v1433 = vld [vmem:[#allocation11 + $0x140] sm:$0xff]
        %v1434 = vld [vmem:[#allocation11 + $0x148] sm:$0xff]
        %v1435 = vld [vmem:[#allocation11 + $0x150] sm:$0xff]
        %v1436 = vld [vmem:[#allocation11 + $0x158] sm:$0xff]
        %v1437 = vld [vmem:[#allocation11 + $0x160] sm:$0xff]
        %v1438 = vld [vmem:[#allocation11 + $0x168] sm:$0xff]
        %v1439 = vld [vmem:[#allocation11 + $0x170] sm:$0xff]
        %v1440 = vld [vmem:[#allocation11 + $0x178] sm:$0xff]
        %v1441 = vld [vmem:[#allocation11 + $0x180] sm:$0xff]
        %v1442 = vld [vmem:[#allocation11 + $0x188] sm:$0xff]
        %v1443 = vld [vmem:[#allocation11 + $0x190] sm:$0xff]
        %v1444 = vld [vmem:[#allocation11 + $0x198] sm:$0xff]
        %v1445 = vld [vmem:[#allocation11 + $0x1a0] sm:$0xff]
        %v1446 = vld [vmem:[#allocation11 + $0x1a8] sm:$0xff]
        %v1447 = vld [vmem:[#allocation11 + $0x1b0] sm:$0xff]
        %v1448 = vld [vmem:[#allocation11 + $0x1b8] sm:$0xff]
        %v1449 = vld [vmem:[#allocation11 + $0x1c0] sm:$0xff]
        %v1450 = vld [vmem:[#allocation11 + $0x1c8] sm:$0xff]
        %v1451 = vld [vmem:[#allocation11 + $0x1d0] sm:$0xff]
        %v1452 = vld [vmem:[#allocation11 + $0x1d8] sm:$0xff]
        %v1453 = vld [vmem:[#allocation11 + $0x1e0] sm:$0xff]
        %v1454 = vld [vmem:[#allocation11 + $0x1e8] sm:$0xff]
        %v1455 = vld [vmem:[#allocation11 + $0x1f0] sm:$0xff]
        %v1456 = vld [vmem:[#allocation11 + $0x1f8] sm:$0xff]
        %v1457 = vld [vmem:[%s9] sm:$0xf]
        %v1459 = vperm.slane %v1457, 0
        %v1460 = vperm.slane %v1457, 1
        %v1461 = vperm.slane %v1457, 2
        %v1462 = vperm.slane %v1457, 3
        %1467 = vmatpush.msra.mxu0 %v1453
        %1468 = vmatpush.msra.mxu0 %v1449
        %1469 = vmatpush.msra.mxu0 %v1445
        %1470 = vmatpush.msra.mxu0 %v1441
        %1471 = vmatpush.msra.mxu0 %v1437
        %1472 = vmatpush.msra.mxu0 %v1433
        %1473 = vmatpush.msra.mxu0 %v1429
        %1474 = vmatpush.msra.mxu0 %v1425
        %1475 = vmatpush.msra.mxu0 %v1421
        %1476 = vmatpush.msra.mxu0 %v1417
        %1477 = vmatpush.msra.mxu0 %v1413
        %1478 = vmatpush.msra.mxu0 %v1409
        %1479 = vmatpush.msra.mxu0 %v1405
        %1480 = vmatpush.msra.mxu0 %v1401
        %1481 = vmatpush.msra.mxu0 %v1397
        %1482 = vmatpush.msra.mxu0 %v1393
        %1483 = vmatmul.f32.gmra.mxu0 %v1391
        %v1484 = vpop.f32.mrf.mxu0
        %v1485 = vadd.f32 %v1459, %v1484
        %1486 = vmatmul.f32.gmra.mxu0 %v1392
        %v1487 = vpop.f32.mrf.mxu0
        %v1488 = vadd.f32 %v1459, %v1487
        %1489 = vdwg.mxu0
        %1490 = vmatpush.msra.mxu0 %v1454
        %1491 = vmatpush.msra.mxu0 %v1450
        %1492 = vmatpush.msra.mxu0 %v1446
        %1493 = vmatpush.msra.mxu0 %v1442
        %1494 = vmatpush.msra.mxu0 %v1438
        %1495 = vmatpush.msra.mxu0 %v1434
        %1496 = vmatpush.msra.mxu0 %v1430
        %1497 = vmatpush.msra.mxu0 %v1426
        %1498 = vmatpush.msra.mxu0 %v1422
        %1499 = vmatpush.msra.mxu0 %v1418
        %1500 = vmatpush.msra.mxu0 %v1414
        %1501 = vmatpush.msra.mxu0 %v1410
        %1502 = vmatpush.msra.mxu0 %v1406
        %1503 = vmatpush.msra.mxu0 %v1402
        %1504 = vmatpush.msra.mxu0 %v1398
        %1505 = vmatpush.msra.mxu0 %v1394
        %1506 = vmatmul.f32.gmra.mxu0 %v1391
        %v1507 = vpop.f32.mrf.mxu0
        %v1508 = vadd.f32 %v1460, %v1507
        %1509 = vmatmul.f32.gmra.mxu0 %v1392
        %v1510 = vpop.f32.mrf.mxu0
        %v1511 = vadd.f32 %v1460, %v1510
        %1512 = vdwg.mxu0
        %1513 = vmatpush.msra.mxu0 %v1455
        %1514 = vmatpush.msra.mxu0 %v1451
        %1515 = vmatpush.msra.mxu0 %v1447
        %1516 = vmatpush.msra.mxu0 %v1443
        %1517 = vmatpush.msra.mxu0 %v1439
        %1518 = vmatpush.msra.mxu0 %v1435
        %1519 = vmatpush.msra.mxu0 %v1431
        %1520 = vmatpush.msra.mxu0 %v1427
        %1521 = vmatpush.msra.mxu0 %v1423
        %1522 = vmatpush.msra.mxu0 %v1419
        %1523 = vmatpush.msra.mxu0 %v1415
        %1524 = vmatpush.msra.mxu0 %v1411
        %1525 = vmatpush.msra.mxu0 %v1407
        %1526 = vmatpush.msra.mxu0 %v1403
        %1527 = vmatpush.msra.mxu0 %v1399
        %1528 = vmatpush.msra.mxu0 %v1395
        %1529 = vmatmul.f32.gmra.mxu0 %v1391
        %v1530 = vpop.f32.mrf.mxu0
        %v1531 = vadd.f32 %v1461, %v1530
        %1532 = vmatmul.f32.gmra.mxu0 %v1392
        %v1533 = vpop.f32.mrf.mxu0
        %v1534 = vadd.f32 %v1461, %v1533
        %1535 = vdwg.mxu0
        %1536 = vmatpush.msra.mxu0 %v1456
        %1537 = vmatpush.msra.mxu0 %v1452
        %1538 = vmatpush.msra.mxu0 %v1448
        %1539 = vmatpush.msra.mxu0 %v1444
        %1540 = vmatpush.msra.mxu0 %v1440
        %1541 = vmatpush.msra.mxu0 %v1436
        %1542 = vmatpush.msra.mxu0 %v1432
        %1543 = vmatpush.msra.mxu0 %v1428
        %1544 = vmatpush.msra.mxu0 %v1424
        %1545 = vmatpush.msra.mxu0 %v1420
        %1546 = vmatpush.msra.mxu0 %v1416
        %1547 = vmatpush.msra.mxu0 %v1412
        %1548 = vmatpush.msra.mxu0 %v1408
        %1549 = vmatpush.msra.mxu0 %v1404
        %1550 = vmatpush.msra.mxu0 %v1400
        %1551 = vmatpush.msra.mxu0 %v1396
        %1552 = vmatmul.f32.gmra.mxu0 %v1391
        %v1553 = vpop.f32.mrf.mxu0
        %v1554 = vadd.f32 %v1462, %v1553
        %1555 = vmatmul.f32.gmra.mxu0 %v1392
        %v1556 = vpop.f32.mrf.mxu0
        %v1557 = vadd.f32 %v1462, %v1556
        %1558 = vdwg.mxu0
        %v1559 = vmul.f32 %v1485, 0.5
        %v1560 = vmul.f32 %v1508, 0.5
        %v1561 = vmul.f32 %v1531, 0.5
        %v1562 = vmul.f32 %v1554, 0.5
        %v1563 = vmul.f32 %v1488, 0.5
        %v1564 = vmul.f32 %v1511, 0.5
        %v1565 = vmul.f32 %v1534, 0.5
        %v1566 = vmul.f32 %v1557, 0.5
        %v1567 = vmul.f32 %v1485, 0.70710677
        %v1568 = vmul.f32 %v1508, 0.70710677
        %v1569 = vmul.f32 %v1531, 0.70710677
        %v1570 = vmul.f32 %v1554, 0.70710677
        %v1571 = vmul.f32 %v1488, 0.70710677
        %v1572 = vmul.f32 %v1511, 0.70710677
        %v1573 = vmul.f32 %v1534, 0.70710677
        %v1574 = vmul.f32 %v1557, 0.70710677
        %vm1575 = vcmp.ge.f32.partialorder %v1567, 0.0
        %vm1576 = vcmp.ge.f32.partialorder %v1568, 0.0
        %vm1577 = vcmp.ge.f32.partialorder %v1569, 0.0
        %vm1578 = vcmp.ge.f32.partialorder %v1570, 0.0
        %vm1579 = vcmp.ge.f32.partialorder %v1571, 0.0
        %vm1580 = vcmp.ge.f32.partialorder %v1572, 0.0
        %vm1581 = vcmp.ge.f32.partialorder %v1573, 0.0
        %vm1582 = vcmp.ge.f32.partialorder %v1574, 0.0
        %v1583 = vsel %vm1575, 1.0, -1.0
        %v1584 = vsel %vm1576, 1.0, -1.0
        %v1585 = vsel %vm1577, 1.0, -1.0
        %v1586 = vsel %vm1578, 1.0, -1.0
        %v1587 = vsel %vm1579, 1.0, -1.0
        %v1588 = vsel %vm1580, 1.0, -1.0
        %v1589 = vsel %vm1581, 1.0, -1.0
        %v1590 = vsel %vm1582, 1.0, -1.0
        %v1591 = vand.u32 2147483647, %v1567
        %v1592 = vand.u32 2147483647, %v1568
        %v1593 = vand.u32 2147483647, %v1569
        %v1594 = vand.u32 2147483647, %v1570
        %v1595 = vand.u32 2147483647, %v1571
        %v1596 = vand.u32 2147483647, %v1572
        %v1597 = vand.u32 2147483647, %v1573
        %v1598 = vand.u32 2147483647, %v1574
        %v1599 = vmul.f32 %v1591, 0.3275911
        %v1600 = vmul.f32 %v1592, 0.3275911
        %v1601 = vmul.f32 %v1593, 0.3275911
        %v1602 = vmul.f32 %v1594, 0.3275911
        %v1603 = vmul.f32 %v1595, 0.3275911
        %v1604 = vmul.f32 %v1596, 0.3275911
        %v1605 = vmul.f32 %v1597, 0.3275911
        %v1606 = vmul.f32 %v1598, 0.3275911
        %v1607 = vadd.f32 %v1599, 1.0
        %v1608 = vadd.f32 %v1600, 1.0
        %v1609 = vadd.f32 %v1601, 1.0
        %v1610 = vadd.f32 %v1602, 1.0
        %v1611 = vadd.f32 %v1603, 1.0
        %v1612 = vadd.f32 %v1604, 1.0
        %v1613 = vadd.f32 %v1605, 1.0
        %v1614 = vadd.f32 %v1606, 1.0
        %v1615 = vrcp.pop %v1607
        %v1616 = vmul.f32 %v1607, %v1615
        %v1617 = vsub.f32 1.0, %v1616
        %v1618 = vmul.f32 %v1615, %v1617
        %v1619 = vadd.f32 %v1615, %v1618
        %vm1620 = vweird.f32 %v1607
        %vm1621 = vweird.f32 %v1615
        %vm1622 = vmor %vm1620, %vm1621
        %v1623 = vsel %vm1622, %v1615, %v1619
        %v1624 = vand.u32 2147483647, %v1607
        %vm1625 = vcmp.eq.f32.partialorder %v1624, 8.507059e+37
        %v1626 = vand.u32 %v1607, 2147483648
        %v1627 = vor.u32 1.1754944e-38, %v1626
        %v1628 = vsel %vm1625, %v1627, %v1623
        %v1629 = vmul.f32 1.0, %v1628
        %v1630 = vrcp.pop %v1608
        %v1631 = vmul.f32 %v1608, %v1630
        %v1632 = vsub.f32 1.0, %v1631
        %v1633 = vmul.f32 %v1630, %v1632
        %v1634 = vadd.f32 %v1630, %v1633
        %vm1635 = vweird.f32 %v1608
        %vm1636 = vweird.f32 %v1630
        %vm1637 = vmor %vm1635, %vm1636
        %v1638 = vsel %vm1637, %v1630, %v1634
        %v1639 = vand.u32 2147483647, %v1608
        %vm1640 = vcmp.eq.f32.partialorder %v1639, 8.507059e+37
        %v1641 = vand.u32 %v1608, 2147483648
        %v1642 = vor.u32 1.1754944e-38, %v1641
        %v1643 = vsel %vm1640, %v1642, %v1638
        %v1644 = vmul.f32 1.0, %v1643
        %v1645 = vrcp.pop %v1609
        %v1646 = vmul.f32 %v1609, %v1645
        %v1647 = vsub.f32 1.0, %v1646
        %v1648 = vmul.f32 %v1645, %v1647
        %v1649 = vadd.f32 %v1645, %v1648
        %vm1650 = vweird.f32 %v1609
        %vm1651 = vweird.f32 %v1645
        %vm1652 = vmor %vm1650, %vm1651
        %v1653 = vsel %vm1652, %v1645, %v1649
        %v1654 = vand.u32 2147483647, %v1609
        %vm1655 = vcmp.eq.f32.partialorder %v1654, 8.507059e+37
        %v1656 = vand.u32 %v1609, 2147483648
        %v1657 = vor.u32 1.1754944e-38, %v1656
        %v1658 = vsel %vm1655, %v1657, %v1653
        %v1659 = vmul.f32 1.0, %v1658
        %v1660 = vrcp.pop %v1610
        %v1661 = vmul.f32 %v1610, %v1660
        %v1662 = vsub.f32 1.0, %v1661
        %v1663 = vmul.f32 %v1660, %v1662
        %v1664 = vadd.f32 %v1660, %v1663
        %vm1665 = vweird.f32 %v1610
        %vm1666 = vweird.f32 %v1660
        %vm1667 = vmor %vm1665, %vm1666
        %v1668 = vsel %vm1667, %v1660, %v1664
        %v1669 = vand.u32 2147483647, %v1610
        %vm1670 = vcmp.eq.f32.partialorder %v1669, 8.507059e+37
        %v1671 = vand.u32 %v1610, 2147483648
        %v1672 = vor.u32 1.1754944e-38, %v1671
        %v1673 = vsel %vm1670, %v1672, %v1668
        %v1674 = vmul.f32 1.0, %v1673
        %v1675 = vrcp.pop %v1611
        %v1676 = vmul.f32 %v1611, %v1675
        %v1677 = vsub.f32 1.0, %v1676
        %v1678 = vmul.f32 %v1675, %v1677
        %v1679 = vadd.f32 %v1675, %v1678
        %vm1680 = vweird.f32 %v1611
        %vm1681 = vweird.f32 %v1675
        %vm1682 = vmor %vm1680, %vm1681
        %v1683 = vsel %vm1682, %v1675, %v1679
        %v1684 = vand.u32 2147483647, %v1611
        %vm1685 = vcmp.eq.f32.partialorder %v1684, 8.507059e+37
        %v1686 = vand.u32 %v1611, 2147483648
        %v1687 = vor.u32 1.1754944e-38, %v1686
        %v1688 = vsel %vm1685, %v1687, %v1683
        %v1689 = vmul.f32 1.0, %v1688
        %v1690 = vrcp.pop %v1612
        %v1691 = vmul.f32 %v1612, %v1690
        %v1692 = vsub.f32 1.0, %v1691
        %v1693 = vmul.f32 %v1690, %v1692
        %v1694 = vadd.f32 %v1690, %v1693
        %vm1695 = vweird.f32 %v1612
        %vm1696 = vweird.f32 %v1690
        %vm1697 = vmor %vm1695, %vm1696
        %v1698 = vsel %vm1697, %v1690, %v1694
        %v1699 = vand.u32 2147483647, %v1612
        %vm1700 = vcmp.eq.f32.partialorder %v1699, 8.507059e+37
        %v1701 = vand.u32 %v1612, 2147483648
        %v1702 = vor.u32 1.1754944e-38, %v1701
        %v1703 = vsel %vm1700, %v1702, %v1698
        %v1704 = vmul.f32 1.0, %v1703
        %v1705 = vrcp.pop %v1613
        %v1706 = vmul.f32 %v1613, %v1705
        %v1707 = vsub.f32 1.0, %v1706
        %v1708 = vmul.f32 %v1705, %v1707
        %v1709 = vadd.f32 %v1705, %v1708
        %vm1710 = vweird.f32 %v1613
        %vm1711 = vweird.f32 %v1705
        %vm1712 = vmor %vm1710, %vm1711
        %v1713 = vsel %vm1712, %v1705, %v1709
        %v1714 = vand.u32 2147483647, %v1613
        %vm1715 = vcmp.eq.f32.partialorder %v1714, 8.507059e+37
        %v1716 = vand.u32 %v1613, 2147483648
        %v1717 = vor.u32 1.1754944e-38, %v1716
        %v1718 = vsel %vm1715, %v1717, %v1713
        %v1719 = vmul.f32 1.0, %v1718
        %v1720 = vrcp.pop %v1614
        %v1721 = vmul.f32 %v1614, %v1720
        %v1722 = vsub.f32 1.0, %v1721
        %v1723 = vmul.f32 %v1720, %v1722
        %v1724 = vadd.f32 %v1720, %v1723
        %vm1725 = vweird.f32 %v1614
        %vm1726 = vweird.f32 %v1720
        %vm1727 = vmor %vm1725, %vm1726
        %v1728 = vsel %vm1727, %v1720, %v1724
        %v1729 = vand.u32 2147483647, %v1614
        %vm1730 = vcmp.eq.f32.partialorder %v1729, 8.507059e+37
        %v1731 = vand.u32 %v1614, 2147483648
        %v1732 = vor.u32 1.1754944e-38, %v1731
        %v1733 = vsel %vm1730, %v1732, %v1728
        %v1734 = vmul.f32 1.0, %v1733
        %v1735 = vmul.f32 %v1629, 1.0614054
        %v1736 = vmul.f32 %v1644, 1.0614054
        %v1737 = vmul.f32 %v1659, 1.0614054
        %v1738 = vmul.f32 %v1674, 1.0614054
        %v1739 = vmul.f32 %v1689, 1.0614054
        %v1740 = vmul.f32 %v1704, 1.0614054
        %v1741 = vmul.f32 %v1719, 1.0614054
        %v1742 = vmul.f32 %v1734, 1.0614054
        %v1743 = vadd.f32 %v1735, -1.4531521
        %v1744 = vadd.f32 %v1736, -1.4531521
        %v1745 = vadd.f32 %v1737, -1.4531521
        %v1746 = vadd.f32 %v1738, -1.4531521
        %v1747 = vadd.f32 %v1739, -1.4531521
        %v1748 = vadd.f32 %v1740, -1.4531521
        %v1749 = vadd.f32 %v1741, -1.4531521
        %v1750 = vadd.f32 %v1742, -1.4531521
        %v1751 = vmul.f32 %v1629, %v1743
        %v1752 = vmul.f32 %v1644, %v1744
        %v1753 = vmul.f32 %v1659, %v1745
        %v1754 = vmul.f32 %v1674, %v1746
        %v1755 = vmul.f32 %v1689, %v1747
        %v1756 = vmul.f32 %v1704, %v1748
        %v1757 = vmul.f32 %v1719, %v1749
        %v1758 = vmul.f32 %v1734, %v1750
        %v1759 = vadd.f32 %v1751, 1.4214138
        %v1760 = vadd.f32 %v1752, 1.4214138
        %v1761 = vadd.f32 %v1753, 1.4214138
        %v1762 = vadd.f32 %v1754, 1.4214138
        %v1763 = vadd.f32 %v1755, 1.4214138
        %v1764 = vadd.f32 %v1756, 1.4214138
        %v1765 = vadd.f32 %v1757, 1.4214138
        %v1766 = vadd.f32 %v1758, 1.4214138
        %v1767 = vmul.f32 %v1629, %v1759
        %v1768 = vmul.f32 %v1644, %v1760
        %v1769 = vmul.f32 %v1659, %v1761
        %v1770 = vmul.f32 %v1674, %v1762
        %v1771 = vmul.f32 %v1689, %v1763
        %v1772 = vmul.f32 %v1704, %v1764
        %v1773 = vmul.f32 %v1719, %v1765
        %v1774 = vmul.f32 %v1734, %v1766
        %v1775 = vadd.f32 %v1767, -0.28449672
        %v1776 = vadd.f32 %v1768, -0.28449672
        %v1777 = vadd.f32 %v1769, -0.28449672
        %v1778 = vadd.f32 %v1770, -0.28449672
        %v1779 = vadd.f32 %v1771, -0.28449672
        %v1780 = vadd.f32 %v1772, -0.28449672
        %v1781 = vadd.f32 %v1773, -0.28449672
        %v1782 = vadd.f32 %v1774, -0.28449672
        %v1783 = vmul.f32 %v1629, %v1775
        %v1784 = vmul.f32 %v1644, %v1776
        %v1785 = vmul.f32 %v1659, %v1777
        %v1786 = vmul.f32 %v1674, %v1778
        %v1787 = vmul.f32 %v1689, %v1779
        %v1788 = vmul.f32 %v1704, %v1780
        %v1789 = vmul.f32 %v1719, %v1781
        %v1790 = vmul.f32 %v1734, %v1782
        %v1791 = vadd.f32 %v1783, 0.2548296
        %v1792 = vadd.f32 %v1784, 0.2548296
        %v1793 = vadd.f32 %v1785, 0.2548296
        %v1794 = vadd.f32 %v1786, 0.2548296
        %v1795 = vadd.f32 %v1787, 0.2548296
        %v1796 = vadd.f32 %v1788, 0.2548296
        %v1797 = vadd.f32 %v1789, 0.2548296
        %v1798 = vadd.f32 %v1790, 0.2548296
        %v1799 = vmul.f32 %v1629, %v1791
        %v1800 = vmul.f32 %v1644, %v1792
        %v1801 = vmul.f32 %v1659, %v1793
        %v1802 = vmul.f32 %v1674, %v1794
        %v1803 = vmul.f32 %v1689, %v1795
        %v1804 = vmul.f32 %v1704, %v1796
        %v1805 = vmul.f32 %v1719, %v1797
        %v1806 = vmul.f32 %v1734, %v1798
        %v1807 = vsub.f32 0.0, %v1591
        %v1808 = vsub.f32 0.0, %v1592
        %v1809 = vsub.f32 0.0, %v1593
        %v1810 = vsub.f32 0.0, %v1594
        %v1811 = vsub.f32 0.0, %v1595
        %v1812 = vsub.f32 0.0, %v1596
        %v1813 = vsub.f32 0.0, %v1597
        %v1814 = vsub.f32 0.0, %v1598
        %v1815 = vmul.f32 %v1807, %v1591
        %v1816 = vmul.f32 %v1808, %v1592
        %v1817 = vmul.f32 %v1809, %v1593
        %v1818 = vmul.f32 %v1810, %v1594
        %v1819 = vmul.f32 %v1811, %v1595
        %v1820 = vmul.f32 %v1812, %v1596
        %v1821 = vmul.f32 %v1813, %v1597
        %v1822 = vmul.f32 %v1814, %v1598
        %v1823 = vmul.f32 %v1815, 1.442695
        %v1824 = vpow.pop %v1823
        %v1825 = vmul.f32 %v1816, 1.442695
        %v1826 = vpow.pop %v1825
        %v1827 = vmul.f32 %v1817, 1.442695
        %v1828 = vpow.pop %v1827
        %v1829 = vmul.f32 %v1818, 1.442695
        %v1830 = vpow.pop %v1829
        %v1831 = vmul.f32 %v1819, 1.442695
        %v1832 = vpow.pop %v1831
        %v1833 = vmul.f32 %v1820, 1.442695
        %v1834 = vpow.pop %v1833
        %v1835 = vmul.f32 %v1821, 1.442695
        %v1836 = vpow.pop %v1835
        %v1837 = vmul.f32 %v1822, 1.442695
        %v1838 = vpow.pop %v1837
        %v1839 = vmul.f32 %v1799, %v1824
        %v1840 = vmul.f32 %v1800, %v1826
        %v1841 = vmul.f32 %v1801, %v1828
        %v1842 = vmul.f32 %v1802, %v1830
        %v1843 = vmul.f32 %v1803, %v1832
        %v1844 = vmul.f32 %v1804, %v1834
        %v1845 = vmul.f32 %v1805, %v1836
        %v1846 = vmul.f32 %v1806, %v1838
        %v1847 = vsub.f32 1.0, %v1839
        %v1848 = vsub.f32 1.0, %v1840
        %v1849 = vsub.f32 1.0, %v1841
        %v1850 = vsub.f32 1.0, %v1842
        %v1851 = vsub.f32 1.0, %v1843
        %v1852 = vsub.f32 1.0, %v1844
        %v1853 = vsub.f32 1.0, %v1845
        %v1854 = vsub.f32 1.0, %v1846
        %v1855 = vmul.f32 %v1583, %v1847
        %v1856 = vmul.f32 %v1584, %v1848
        %v1857 = vmul.f32 %v1585, %v1849
        %v1858 = vmul.f32 %v1586, %v1850
        %v1859 = vmul.f32 %v1587, %v1851
        %v1860 = vmul.f32 %v1588, %v1852
        %v1861 = vmul.f32 %v1589, %v1853
        %v1862 = vmul.f32 %v1590, %v1854
        %v1863 = vadd.f32 %v1855, 1.0
        %v1864 = vadd.f32 %v1856, 1.0
        %v1865 = vadd.f32 %v1857, 1.0
        %v1866 = vadd.f32 %v1858, 1.0
        %v1867 = vadd.f32 %v1859, 1.0
        %v1868 = vadd.f32 %v1860, 1.0
        %v1869 = vadd.f32 %v1861, 1.0
        %v1870 = vadd.f32 %v1862, 1.0
        %v1871 = vmul.f32 %v1559, %v1863
        %v1872 = vmul.f32 %v1560, %v1864
        %v1873 = vmul.f32 %v1561, %v1865
        %v1874 = vmul.f32 %v1562, %v1866
        %v1875 = vmul.f32 %v1563, %v1867
        %v1876 = vmul.f32 %v1564, %v1868
        %v1877 = vmul.f32 %v1565, %v1869
        %v1878 = vmul.f32 %v1566, %v1870
        %v1879 = vld [vmem:[#allocation13] sm:$0xff]
        %v1880 = vld [vmem:[#allocation13 + $0x8] sm:$0xff]
        %v1881 = vld [vmem:[#allocation13 + $0x10] sm:$0xff]
        %v1882 = vld [vmem:[#allocation13 + $0x18] sm:$0xff]
        %v1883 = vld [vmem:[#allocation13 + $0x20] sm:$0xff]
        %v1884 = vld [vmem:[#allocation13 + $0x28] sm:$0xff]
        %v1885 = vld [vmem:[#allocation13 + $0x30] sm:$0xff]
        %v1886 = vld [vmem:[#allocation13 + $0x38] sm:$0xff]
        %v1887 = vld [vmem:[#allocation13 + $0x40] sm:$0xff]
        %v1888 = vld [vmem:[#allocation13 + $0x48] sm:$0xff]
        %v1889 = vld [vmem:[#allocation13 + $0x50] sm:$0xff]
        %v1890 = vld [vmem:[#allocation13 + $0x58] sm:$0xff]
        %v1891 = vld [vmem:[#allocation13 + $0x60] sm:$0xff]
        %v1892 = vld [vmem:[#allocation13 + $0x68] sm:$0xff]
        %v1893 = vld [vmem:[#allocation13 + $0x70] sm:$0xff]
        %v1894 = vld [vmem:[#allocation13 + $0x78] sm:$0xff]
        %v1895 = vld [vmem:[#allocation13 + $0x80] sm:$0xff]
        %v1896 = vld [vmem:[#allocation13 + $0x88] sm:$0xff]
        %v1897 = vld [vmem:[#allocation13 + $0x90] sm:$0xff]
        %v1898 = vld [vmem:[#allocation13 + $0x98] sm:$0xff]
        %v1899 = vld [vmem:[#allocation13 + $0xa0] sm:$0xff]
        %v1900 = vld [vmem:[#allocation13 + $0xa8] sm:$0xff]
        %v1901 = vld [vmem:[#allocation13 + $0xb0] sm:$0xff]
        %v1902 = vld [vmem:[#allocation13 + $0xb8] sm:$0xff]
        %v1903 = vld [vmem:[#allocation13 + $0xc0] sm:$0xff]
        %v1904 = vld [vmem:[#allocation13 + $0xc8] sm:$0xff]
        %v1905 = vld [vmem:[#allocation13 + $0xd0] sm:$0xff]
        %v1906 = vld [vmem:[#allocation13 + $0xd8] sm:$0xff]
        %v1907 = vld [vmem:[#allocation13 + $0xe0] sm:$0xff]
        %v1908 = vld [vmem:[#allocation13 + $0xe8] sm:$0xff]
        %v1909 = vld [vmem:[#allocation13 + $0xf0] sm:$0xff]
        %v1910 = vld [vmem:[#allocation13 + $0xf8] sm:$0xff]
        %v1911 = vld [vmem:[#allocation13 + $0x100] sm:$0xff]
        %v1912 = vld [vmem:[#allocation13 + $0x108] sm:$0xff]
        %v1913 = vld [vmem:[#allocation13 + $0x110] sm:$0xff]
        %v1914 = vld [vmem:[#allocation13 + $0x118] sm:$0xff]
        %v1915 = vld [vmem:[#allocation13 + $0x120] sm:$0xff]
        %v1916 = vld [vmem:[#allocation13 + $0x128] sm:$0xff]
        %v1917 = vld [vmem:[#allocation13 + $0x130] sm:$0xff]
        %v1918 = vld [vmem:[#allocation13 + $0x138] sm:$0xff]
        %v1919 = vld [vmem:[#allocation13 + $0x140] sm:$0xff]
        %v1920 = vld [vmem:[#allocation13 + $0x148] sm:$0xff]
        %v1921 = vld [vmem:[#allocation13 + $0x150] sm:$0xff]
        %v1922 = vld [vmem:[#allocation13 + $0x158] sm:$0xff]
        %v1923 = vld [vmem:[#allocation13 + $0x160] sm:$0xff]
        %v1924 = vld [vmem:[#allocation13 + $0x168] sm:$0xff]
        %v1925 = vld [vmem:[#allocation13 + $0x170] sm:$0xff]
        %v1926 = vld [vmem:[#allocation13 + $0x178] sm:$0xff]
        %v1927 = vld [vmem:[#allocation13 + $0x180] sm:$0xff]
        %v1928 = vld [vmem:[#allocation13 + $0x188] sm:$0xff]
        %v1929 = vld [vmem:[#allocation13 + $0x190] sm:$0xff]
        %v1930 = vld [vmem:[#allocation13 + $0x198] sm:$0xff]
        %v1931 = vld [vmem:[#allocation13 + $0x1a0] sm:$0xff]
        %v1932 = vld [vmem:[#allocation13 + $0x1a8] sm:$0xff]
        %v1933 = vld [vmem:[#allocation13 + $0x1b0] sm:$0xff]
        %v1934 = vld [vmem:[#allocation13 + $0x1b8] sm:$0xff]
        %v1935 = vld [vmem:[#allocation13 + $0x1c0] sm:$0xff]
        %v1936 = vld [vmem:[#allocation13 + $0x1c8] sm:$0xff]
        %v1937 = vld [vmem:[#allocation13 + $0x1d0] sm:$0xff]
        %v1938 = vld [vmem:[#allocation13 + $0x1d8] sm:$0xff]
        %v1939 = vld [vmem:[#allocation13 + $0x1e0] sm:$0xff]
        %v1940 = vld [vmem:[#allocation13 + $0x1e8] sm:$0xff]
        %v1941 = vld [vmem:[#allocation13 + $0x1f0] sm:$0xff]
        %v1942 = vld [vmem:[#allocation13 + $0x1f8] sm:$0xff]
        %v1943 = vld [vmem:[%s11] sm:$0x1]
        %v1945 = vperm.slane %v1943, 0
        %1947 = vmatpush.msra.mxu0 %v1894
        %1948 = vmatpush.msra.mxu0 %v1893
        %1949 = vmatpush.msra.mxu0 %v1892
        %1950 = vmatpush.msra.mxu0 %v1891
        %1951 = vmatpush.msra.mxu0 %v1890
        %1952 = vmatpush.msra.mxu0 %v1889
        %1953 = vmatpush.msra.mxu0 %v1888
        %1954 = vmatpush.msra.mxu0 %v1887
        %1955 = vmatpush.msra.mxu0 %v1886
        %1956 = vmatpush.msra.mxu0 %v1885
        %1957 = vmatpush.msra.mxu0 %v1884
        %1958 = vmatpush.msra.mxu0 %v1883
        %1959 = vmatpush.msra.mxu0 %v1882
        %1960 = vmatpush.msra.mxu0 %v1881
        %1961 = vmatpush.msra.mxu0 %v1880
        %1962 = vmatpush.msra.mxu0 %v1879
        %1963 = vmatmul.f32.gmra.mxu0 %v1871
        %v1964 = vpop.f32.mrf.mxu0
        %v1965 = vadd.f32 %v1945, %v1964
        %1966 = vmatmul.f32.gmra.mxu0 %v1875
        %v1967 = vpop.f32.mrf.mxu0
        %v1968 = vadd.f32 %v1945, %v1967
        %1969 = vdwg.mxu0
        %1970 = vmatpush.msra.mxu0 %v1910
        %1971 = vmatpush.msra.mxu0 %v1909
        %1972 = vmatpush.msra.mxu0 %v1908
        %1973 = vmatpush.msra.mxu0 %v1907
        %1974 = vmatpush.msra.mxu0 %v1906
        %1975 = vmatpush.msra.mxu0 %v1905
        %1976 = vmatpush.msra.mxu0 %v1904
        %1977 = vmatpush.msra.mxu0 %v1903
        %1978 = vmatpush.msra.mxu0 %v1902
        %1979 = vmatpush.msra.mxu0 %v1901
        %1980 = vmatpush.msra.mxu0 %v1900
        %1981 = vmatpush.msra.mxu0 %v1899
        %1982 = vmatpush.msra.mxu0 %v1898
        %1983 = vmatpush.msra.mxu0 %v1897
        %1984 = vmatpush.msra.mxu0 %v1896
        %1985 = vmatpush.msra.mxu0 %v1895
        %1986 = vmatmul.f32.gmra.mxu0 %v1872
        %v1987 = vpop.f32.mrf.mxu0
        %v1988 = vadd.f32 %v1965, %v1987
        %1989 = vmatmul.f32.gmra.mxu0 %v1876
        %v1990 = vpop.f32.mrf.mxu0
        %v1991 = vadd.f32 %v1968, %v1990
        %1992 = vdwg.mxu0
        %1993 = vmatpush.msra.mxu0 %v1926
        %1994 = vmatpush.msra.mxu0 %v1925
        %1995 = vmatpush.msra.mxu0 %v1924
        %1996 = vmatpush.msra.mxu0 %v1923
        %1997 = vmatpush.msra.mxu0 %v1922
        %1998 = vmatpush.msra.mxu0 %v1921
        %1999 = vmatpush.msra.mxu0 %v1920
        %2000 = vmatpush.msra.mxu0 %v1919
        %2001 = vmatpush.msra.mxu0 %v1918
        %2002 = vmatpush.msra.mxu0 %v1917
        %2003 = vmatpush.msra.mxu0 %v1916
        %2004 = vmatpush.msra.mxu0 %v1915
        %2005 = vmatpush.msra.mxu0 %v1914
        %2006 = vmatpush.msra.mxu0 %v1913
        %2007 = vmatpush.msra.mxu0 %v1912
        %2008 = vmatpush.msra.mxu0 %v1911
        %2009 = vmatmul.f32.gmra.mxu0 %v1873
        %v2010 = vpop.f32.mrf.mxu0
        %v2011 = vadd.f32 %v1988, %v2010
        %2012 = vmatmul.f32.gmra.mxu0 %v1877
        %v2013 = vpop.f32.mrf.mxu0
        %v2014 = vadd.f32 %v1991, %v2013
        %2015 = vdwg.mxu0
        %2016 = vmatpush.msra.mxu0 %v1942
        %2017 = vmatpush.msra.mxu0 %v1941
        %2018 = vmatpush.msra.mxu0 %v1940
        %2019 = vmatpush.msra.mxu0 %v1939
        %2020 = vmatpush.msra.mxu0 %v1938
        %2021 = vmatpush.msra.mxu0 %v1937
        %2022 = vmatpush.msra.mxu0 %v1936
        %2023 = vmatpush.msra.mxu0 %v1935
        %2024 = vmatpush.msra.mxu0 %v1934
        %2025 = vmatpush.msra.mxu0 %v1933
        %2026 = vmatpush.msra.mxu0 %v1932
        %2027 = vmatpush.msra.mxu0 %v1931
        %2028 = vmatpush.msra.mxu0 %v1930
        %2029 = vmatpush.msra.mxu0 %v1929
        %2030 = vmatpush.msra.mxu0 %v1928
        %2031 = vmatpush.msra.mxu0 %v1927
        %2032 = vmatmul.f32.gmra.mxu0 %v1874
        %v2033 = vpop.f32.mrf.mxu0
        %v2034 = vadd.f32 %v2011, %v2033
        %2035 = vmatmul.f32.gmra.mxu0 %v1878
        %v2036 = vpop.f32.mrf.mxu0
        %v2037 = vadd.f32 %v2014, %v2036
        %2038 = vdwg.mxu0
        %v2039 = vadd.f32 %v1339, %v2034
        %v2040 = vadd.f32 %v1340, %v2037
        %2041 = vst [vmem:[%s528] sm:$0xff] %v2039
        %2042 = vst [vmem:[%s528 + $0x8] sm:$0xff] %v2040
        %s2043 = sand.u32 %s297, 1
        %s2044 = scalar_lea.sflag [#allocation4], %s2043
        %s2045 = sand.u32 %s297, 1
        %s2046 = smul.addr %s2045, 16
        %s2047 = scalar_lea.vmem [#allocation14], %s2046
        // Predicated region
        $region97: #{tpu_custom_call.1} parent=67 // pred_check
          %p2048 = pneg %p307
        $region98: #{tpu_custom_call.1} parent=67 // pred_check_branch
          %2050 = sbr.rel (%p2048) target = $region100
        $region99: #{tpu_custom_call.1} parent=67 // pred_region
          %2052 = vsyncadd %s2044, 0
          %s2053 = smul.addr %s32, 2
          %s2054 = smul.addr %s2053, 8
          %s2055 = scalar_lea.hbm %s12, %s2054
          %s2056 = sshll.u32 %s2047, 4
          %s2057 = int_to_ptr.vmem [resolvable:$true] %s2056
          %s2058 = sshll.u32 %s2055, 4
          %s2059 = int_to_ptr.hbm [resolvable:$true] %s2058
          %2064 = dma.vmem_to_hbm [thread:$0]  %s2057, 256, %s2059, %s2044, 128, 128, 8
        $region100: #{tpu_custom_call.1} parent=67 // pred_fallthru
          _
      $region68: #{tpu_custom_call.1} parent=5 // pred_fallthru
        _
      %p2065 = scmp.le.s32.totalorder 2, %s27
      // Predicated region
      $region101: #{tpu_custom_call.1} parent=5 // pred_check
        %p2066 = pneg %p2065
      $region102: #{tpu_custom_call.1} parent=5 // pred_check_branch
        %2068 = sbr.rel (%p2066) target = $region104
      $region103: #{tpu_custom_call.1} parent=5 // pred_region
        %s2069 = ssub.s32 %s27, 2
        // Predicated region
        $region105: #{tpu_custom_call.1} parent=103 // pred_check
          %p2070 = pneg %p313
        $region106: #{tpu_custom_call.1} parent=103 // pred_check_branch
          %2072 = sbr.rel (%p2070) target = $region108
        $region107: #{tpu_custom_call.1} parent=103 // pred_region
          %s2073 = sand.u32 %s298, 1
          %s2074 = scalar_lea.sflag [#allocation4], %s2073
          %s2075 = sand.u32 %s298, 1
          %s2076 = smul.addr %s2075, 16
          %s2077 = scalar_lea.vmem [#allocation14], %s2076
          %2079 = dma.done %s2074, 256
        $region108: #{tpu_custom_call.1} parent=103 // pred_fallthru
          _
      $region104: #{tpu_custom_call.1} parent=5 // pred_fallthru
        _
    $region6: #{tpu_custom_call.1} parent=1 // loop_footer
      %s31 = sadd.s32 1, %s27
    $region7: #{tpu_custom_call.1} parent=1 // loop_footer_branch
      %26 = sbr.rel target = $region3
    $region8: #{tpu_custom_call.1} parent=1 // loop_exit
      _
    %2080 = vsyncpa [#allocation3], 1
    %s2081 = scalar_lea.sflag [#allocation3], 1
    %2082 = vsyncpa %s2081, 1
    %2083 = vsyncpa [#allocation6], 1
    %2084 = vsyncpa [#allocation9], 1
    %2085 = vsyncpa [#allocation12], 1
    %2086 = vsyncpa [#allocation4], 1
    %s2087 = scalar_lea.sflag [#allocation4], 1
    %2088 = vsyncpa %s2087, 1

</llo_original>
